<compile_context>
chip_gen: v6e
topology: v6e:2x2x1
jax: 0.10.0
libtpu: 0.0.40
codegen_flags: <defaults>
</compile_context>

<pallas_src>
import functools

import jax
import jax.numpy as jnp
from jax.experimental import pallas as pl
from jax.experimental.pallas import tpu as pltpu


_CHUNK = 256  # A row-panel height (multiple of the (16,128) bf16 tile rows).


# ---------------------------------------------------------------------------
# Fused 3-layer kernel with manually streamed adjacency.
# ---------------------------------------------------------------------------
def _net_kernel(a_hbm, x_ref, w1_ref, b1_ref, w2_ref, b2_ref, w3_ref, b3_ref,
                o_ref, a_buf, xw_ref, h1_ref, h2_ref, sems,
                *, n_chunks, chunk, resident):
    f32 = jnp.float32
    ahead = min(8, n_chunks) if resident else 1   # in-flight A panel DMAs

    # --- manual A streaming helpers (HBM row panel -> VMEM) -----------------
    def _src(c):
        return a_hbm.at[pl.ds(c * chunk, chunk)]

    def _dst(c):
        if resident:
            return a_buf.at[pl.ds(c * chunk, chunk)]
        return a_buf.at[c % 2]

    def _sem(c):
        return sems.at[c] if resident else sems.at[c % 2]

    def _start(c):
        pltpu.make_async_copy(_src(c), _dst(c), _sem(c)).start()

    def _wait(c):
        pltpu.make_async_copy(_src(c), _dst(c), _sem(c)).wait()

    def _panel(c):
        if resident:
            return a_buf[pl.ds(c * chunk, chunk), :]
        return a_buf[c % 2]

    # Kick off the A download before any compute so the DMA overlaps the
    # (tiny) VPU work below.
    for c in range(ahead):
        _start(c)

    # Layer-1 reassociation: (A @ x) @ W1 == A @ (x * W1); x is [N,1] so x*W1
    # is a VPU broadcast multiply and the MXU gets a 32-lane RHS.
    xw_ref[...] = (x_ref[...] * w1_ref[...]).astype(xw_ref.dtype)

    def stream(body, *, fetch, primed):
        """body(c, a_panel) over all row panels of A; when `fetch`, overlap the
        next panel's DMA with the current panel's compute."""
        if fetch and not primed:
            for c in range(ahead):
                _start(c)
        for c in range(n_chunks):
            if fetch:
                _wait(c)
                if c + ahead < n_chunks:
                    _start(c + ahead)
            body(c, _panel(c))

    # ---- Layer 1: h1 = relu(A @ (x*W1) + b1), overlapped with the A DMA -----
    def layer1(c, a_blk):
        h = jnp.dot(a_blk, xw_ref[...], preferred_element_type=f32) + b1_ref[...]
        h1_ref[pl.ds(c * chunk, chunk), :] = jnp.maximum(h, 0.0).astype(h1_ref.dtype)

    stream(layer1, fetch=True, primed=True)

    # ---- Layer 2: h2 = relu((A @ h1) @ W2 + b2) -----------------------------
    def layer2(c, a_blk):
        agg = jnp.dot(a_blk, h1_ref[...], preferred_element_type=f32)
        h = jnp.dot(agg.astype(w2_ref.dtype), w2_ref[...],
                    preferred_element_type=f32) + b2_ref[...]
        h2_ref[pl.ds(c * chunk, chunk), :] = jnp.maximum(h, 0.0).astype(h2_ref.dtype)

    stream(layer2, fetch=not resident, primed=False)

    # ---- Layer 3: out = (A @ h2) @ W3 + b3 (no ReLU), 128-lane dense store ---
    def layer3(c, a_blk):
        agg = jnp.dot(a_blk, h2_ref[...], preferred_element_type=f32)
        out = jnp.dot(agg.astype(w3_ref.dtype), w3_ref[...],
                      preferred_element_type=f32) + b3_ref[...]
        o_ref[pl.ds(c * chunk, chunk), :] = out.astype(o_ref.dtype)

    stream(layer3, fetch=not resident, primed=False)


# ---------------------------------------------------------------------------
# VMEM budgets / path selection.
# ---------------------------------------------------------------------------
def _vmem_limit_bytes():
    """Scoped-VMEM budget per chip generation (headroom left for the compiler)."""
    try:
        kind = jax.devices()[0].device_kind.lower()
    except Exception:
        kind = ""
    if "v7" in kind:
        return 48 * 1024 * 1024          # 64 MiB/TensorCore physical on v7x
    if any(k in kind for k in ("v4", "v5", "v6", "trillium")):
        return 100 * 1024 * 1024         # 128 MiB physical on v4/v5e/v5p/v6e
    return 64 * 1024 * 1024              # conservative default for unknown parts


def _per_row_activation_bytes(f1, f2, f3):
    # x input (f32, lane-padded to 128 lanes) + xw/h1/h2 bf16 scratch
    # + f32 output + f32 temporaries (xw pre-cast, agg, projection results).
    return 512 + 2 * f1 + 2 * f1 + 2 * f2 + 4 * f3 + 4 * (f1 + f2 + f3)


def _resident_fits(n, f1, f2, f3, limit):
    need = n * (2 * n + _per_row_activation_bytes(f1, f2, f3)) + (2 << 20)
    return need <= limit


def _streaming_fits(n, chunk, f1, f2, f3, limit):
    need = (n * _per_row_activation_bytes(f1, f2, f3)
            + 2 * (chunk * n * 2)          # double-buffered bf16 A panels
            + (2 << 20))
    return need <= limit


# ---------------------------------------------------------------------------
# Parameters & forward.
# ---------------------------------------------------------------------------
def init_params(key):
    """Net: GCNLayer(1, 32), GCNLayer(32, 64), GCNLayer(64, 128).

    nn.Linear(in, out) keeps weight [out, in] and bias [out]; we store the
    transposed weight [in, out] and the bias reshaped to [1, out].
    """
    dims = [(1, 32), (32, 64), (64, 128)]
    params = []
    for i, (f_in, f_out) in enumerate(dims):
        kw, kb = jax.random.split(jax.random.fold_in(key, i))
        bound = 1.0 / jnp.sqrt(jnp.float32(f_in))
        w_t = jax.random.uniform(kw, (f_in, f_out), jnp.float32, -bound, bound)
        b = jax.random.uniform(kb, (1, f_out), jnp.float32, -bound, bound)
        params.append((w_t, b))
    return params


def net_forward(adj, features, params, *, force_streaming=False):
    """Full Net forward: relu(L1) -> relu(L2) -> L3 on a dense adjacency."""
    n = adj.shape[0]
    (w1, b1), (w2, b2), (w3, b3) = params
    f1, f2, f3 = w1.shape[1], w2.shape[1], w3.shape[1]

    # Zero-pad N up to a multiple of the panel height.  Padding is exact:
    # padded A rows/cols and feature rows are zero, so padded (bias-only) rows
    # never feed back into real rows; padded output rows are sliced away.
    chunk = _CHUNK
    n_pad = max(chunk, ((n + chunk - 1) // chunk) * chunk)
    pad = n_pad - n
    adj_p = jnp.pad(adj.astype(jnp.bfloat16), ((0, pad), (0, pad)))
    x_p = jnp.pad(features.astype(jnp.float32), ((0, pad), (0, 0)))

    limit = _vmem_limit_bytes()
    resident = (not force_streaming) and _resident_fits(n_pad, f1, f2, f3, limit)
    if not resident and not _streaming_fits(n_pad, chunk, f1, f2, f3, limit):
        # TODO(synk): graphs this large need 2-D (row, col) tiling of A with a
        # K-accumulator (pltpu.emit_pipeline); not implemented here.
        raise NotImplementedError(
            f"adjacency with {n} nodes exceeds the VMEM streaming budget")

    n_chunks = n_pad // chunk
    kernel = functools.partial(_net_kernel, n_chunks=n_chunks, chunk=chunk,
                               resident=resident)

    vmem = pl.BlockSpec(memory_space=pltpu.MemorySpace.VMEM)
    if resident:
        a_scratch = pltpu.VMEM((n_pad, n_pad), jnp.bfloat16)     # A resident
        sem_shape = (n_chunks,)
    else:
        a_scratch = pltpu.VMEM((2, chunk, n_pad), jnp.bfloat16)  # panel ring
        sem_shape = (2,)

    out = pl.pallas_call(
        kernel,
        out_shape=jax.ShapeDtypeStruct((n_pad, f3), jnp.float32),
        in_specs=[
            pl.BlockSpec(memory_space=pl.ANY),   # A stays in HBM; manual DMA
            vmem, vmem, vmem, vmem, vmem, vmem, vmem,
        ],
        out_specs=vmem,
        scratch_shapes=[
            a_scratch,
            pltpu.VMEM((n_pad, f1), jnp.bfloat16),   # x * W1
            pltpu.VMEM((n_pad, f1), jnp.bfloat16),   # h1
            pltpu.VMEM((n_pad, f2), jnp.bfloat16),   # h2
            pltpu.SemaphoreType.DMA(sem_shape),
        ],
        compiler_params=pltpu.CompilerParams(vmem_limit_bytes=limit),
    )(adj_p, x_p,
      w1, b1,
      w2.astype(jnp.bfloat16), b2,
      w3.astype(jnp.bfloat16), b3)
    return out[:n]


# ---------------------------------------------------------------------------
# Reference + self-test.
# ---------------------------------------------------------------------------
def ref_forward(adj, x, params):
    """Pure-JAX f32 reference (HIGHEST matmul precision) of the module."""
    hp = jax.lax.Precision.HIGHEST
    (w1, b1), (w2, b2), (w3, b3) = params
    h = jnp.maximum(jnp.dot(jnp.dot(adj, x, precision=hp), w1, precision=hp) + b1, 0.0)
    h = jnp.maximum(jnp.dot(jnp.dot(adj, h, precision=hp), w2, precision=hp) + b2, 0.0)
    return jnp.dot(jnp.dot(adj, h, precision=hp), w3, precision=hp) + b3


def _check_close(name, out, exp, tol):
    # Kernel runs the aggregation/projection matmuls on bf16 operands with f32
    # accumulation, so compare relative to the output magnitude scale.
    scale = max(float(jnp.max(jnp.abs(exp))), 1.0)
    err = float(jnp.max(jnp.abs(out.astype(jnp.float32) - exp))) / scale
    assert err < tol, (name, err)


if __name__ == "__main__":
    key = jax.random.PRNGKey(0)
    k_p, k_g1, k_f1, k_g2, k_f2 = jax.random.split(key, 5)
    params = init_params(k_p)

    # Tiny graph: resident-A path, single panel.
    n1 = 8
    adj1 = (jax.random.uniform(k_g1, (n1, n1)) < 0.5).astype(jnp.float32)
    feat1 = jax.random.normal(k_f1, (n1, 1), jnp.float32)
    out1 = jax.block_until_ready(net_forward(adj1, feat1, params))
    assert out1.shape == (n1, 128), out1.shape
    _check_close("resident-small", out1, ref_forward(adj1, feat1, params), tol=5e-2)

    # Larger graph (pads to 768 -> 3 panels): resident path with the chunked,
    # compute-overlapped A download.
    n2 = 600
    adj2 = (jax.random.uniform(k_g2, (n2, n2)) < 0.3).astype(jnp.float32)
    feat2 = jax.random.normal(k_f2, (n2, 1), jnp.float32)
    exp2 = ref_forward(adj2, feat2, params)
    out2 = jax.block_until_ready(net_forward(adj2, feat2, params))
    assert out2.shape == (n2, 128), out2.shape
    _check_close("resident-chunked", out2, exp2, tol=7e-2)

    # Same graph through the streaming (non-resident, double-buffered) path
    # that is used when A does not fit in VMEM.
    out3 = jax.block_until_ready(
        net_forward(adj2, feat2, params, force_streaming=True))
    assert out3.shape == (n2, 128), out3.shape
    _check_close("streaming", out3, exp2, tol=7e-2)

    print("KERNEL_OK")
</pallas_src>

<mosaic_0001>
module attributes {stable_mosaic.version = 11 : i64} {
  func.func @_net_kernel(%arg0: memref<256x256xbf16, #tpu.memory_space<any>>, %arg1: memref<256x1xf32, #tpu.memory_space<vmem>>, %arg2: memref<1x32xf32, #tpu.memory_space<vmem>>, %arg3: memref<1x32xf32, #tpu.memory_space<vmem>>, %arg4: memref<32x64xbf16, #tpu.memory_space<vmem>>, %arg5: memref<1x64xf32, #tpu.memory_space<vmem>>, %arg6: memref<64x128xbf16, #tpu.memory_space<vmem>>, %arg7: memref<1x128xf32, #tpu.memory_space<vmem>>, %arg8: memref<256x128xf32, #tpu.memory_space<vmem>>, %arg9: memref<256x256xbf16, #tpu.memory_space<vmem>>, %arg10: memref<256x32xbf16, #tpu.memory_space<vmem>>, %arg11: memref<256x32xbf16, #tpu.memory_space<vmem>>, %arg12: memref<256x64xbf16, #tpu.memory_space<vmem>>, %arg13: memref<1x!tpu.dma_semaphore, #tpu.memory_space<semaphore_mem>>) attributes {dimension_semantics = [], scalar_prefetch = 0 : i64, scratch_operands = 5 : i64, tpu.core_type = #tpu.core_type<tc>} {
    %c0_i32 = arith.constant 0 : i32
    %c0_i32_0 = arith.constant 0 : i32
    %c0_i32_1 = arith.constant 0 : i32
    %0 = tpu.memref_slice %arg0[%c0_i32_0, %c0_i32_1] : memref<256x256xbf16, #tpu.memory_space<any>> -> memref<256x256xbf16, #tpu.memory_space<any>>
    %c0_i32_2 = arith.constant 0 : i32
    %c0_i32_3 = arith.constant 0 : i32
    %1 = tpu.memref_slice %arg9[%c0_i32_2, %c0_i32_3] : memref<256x256xbf16, #tpu.memory_space<vmem>> -> memref<256x256xbf16, #tpu.memory_space<vmem>>
    %2 = tpu.memref_slice %arg13[%c0_i32] : memref<1x!tpu.dma_semaphore, #tpu.memory_space<semaphore_mem>> -> memref<1x!tpu.dma_semaphore, #tpu.memory_space<semaphore_mem>>
    %3 = tpu.memref_squeeze %2 : memref<1x!tpu.dma_semaphore, #tpu.memory_space<semaphore_mem>> -> memref<!tpu.dma_semaphore, #tpu.memory_space<semaphore_mem>>
    tpu.enqueue_dma source(%0 : memref<256x256xbf16, #tpu.memory_space<any>>) target(%1 : memref<256x256xbf16, #tpu.memory_space<vmem>>) target_semaphore(%3 : memref<!tpu.dma_semaphore, #tpu.memory_space<semaphore_mem>>)
    %c0 = arith.constant 0 : index
    %c0_4 = arith.constant 0 : index
    %4 = vector.load %arg1[%c0, %c0_4] : memref<256x1xf32, #tpu.memory_space<vmem>>, vector<256x1xf32>
    %c0_5 = arith.constant 0 : index
    %c0_6 = arith.constant 0 : index
    %5 = vector.load %arg2[%c0_5, %c0_6] : memref<1x32xf32, #tpu.memory_space<vmem>>, vector<1x32xf32>
    %6 = vector.broadcast %4 : vector<256x1xf32> to vector<256x32xf32>
    %7 = vector.broadcast %5 : vector<1x32xf32> to vector<256x32xf32>
    %8 = arith.mulf %6, %7 : vector<256x32xf32>
    %9 = arith.truncf %8 : vector<256x32xf32> to vector<256x32xbf16>
    %c0_7 = arith.constant 0 : index
    %c0_8 = arith.constant 0 : index
    %10 = vector.load %arg10[%c0_7, %c0_8] : memref<256x32xbf16, #tpu.memory_space<vmem>>, vector<256x32xbf16>
    tpu.vector_store %arg10[%c0_7, %c0_8], %9 {strides = array<i32>} : memref<256x32xbf16, #tpu.memory_space<vmem>>, vector<256x32xbf16>,
    %c0_i32_9 = arith.constant 0 : i32
    %c0_i32_10 = arith.constant 0 : i32
    %c0_i32_11 = arith.constant 0 : i32
    %11 = tpu.memref_slice %arg0[%c0_i32_10, %c0_i32_11] : memref<256x256xbf16, #tpu.memory_space<any>> -> memref<256x256xbf16, #tpu.memory_space<any>>
    %c0_i32_12 = arith.constant 0 : i32
    %c0_i32_13 = arith.constant 0 : i32
    %12 = tpu.memref_slice %arg9[%c0_i32_12, %c0_i32_13] : memref<256x256xbf16, #tpu.memory_space<vmem>> -> memref<256x256xbf16, #tpu.memory_space<vmem>>
    %13 = tpu.memref_slice %arg13[%c0_i32_9] : memref<1x!tpu.dma_semaphore, #tpu.memory_space<semaphore_mem>> -> memref<1x!tpu.dma_semaphore, #tpu.memory_space<semaphore_mem>>
    %14 = tpu.memref_squeeze %13 : memref<1x!tpu.dma_semaphore, #tpu.memory_space<semaphore_mem>> -> memref<!tpu.dma_semaphore, #tpu.memory_space<semaphore_mem>>
    tpu.wait_dma2 semaphore(%14 : memref<!tpu.dma_semaphore, #tpu.memory_space<semaphore_mem>>) src(%11 : memref<256x256xbf16, #tpu.memory_space<any>>) dst(%12 : memref<256x256xbf16, #tpu.memory_space<vmem>>)
    %c0_14 = arith.constant 0 : index
    %c0_15 = arith.constant 0 : index
    %15 = vector.load %arg9[%c0_14, %c0_15] : memref<256x256xbf16, #tpu.memory_space<vmem>>, vector<256x256xbf16>
    %c0_16 = arith.constant 0 : index
    %c0_17 = arith.constant 0 : index
    %16 = vector.load %arg10[%c0_16, %c0_17] : memref<256x32xbf16, #tpu.memory_space<vmem>>, vector<256x32xbf16>
    %cst = arith.constant dense<0.000000e+00> : vector<256x32xf32>
    %17 = tpu.matmul %15, %16, %cst {dimension_numbers = #tpu.dot_dimension_numbers<[1], [0], [0], [1], [0, 0, 1, 1], [], []>} : vector<256x256xbf16>, vector<256x32xbf16>, vector<256x32xf32> -> vector<256x32xf32>
    %c0_18 = arith.constant 0 : index
    %c0_19 = arith.constant 0 : index
    %18 = vector.load %arg3[%c0_18, %c0_19] : memref<1x32xf32, #tpu.memory_space<vmem>>, vector<1x32xf32>
    %19 = vector.broadcast %18 : vector<1x32xf32> to vector<256x32xf32>
    %20 = arith.addf %17, %19 : vector<256x32xf32>
    %cst_20 = arith.constant 0.000000e+00 : f32
    %21 = vector.broadcast %cst_20 : f32 to vector<256x32xf32>
    %22 = arith.maximumf %20, %21 : vector<256x32xf32>
    %23 = arith.truncf %22 : vector<256x32xf32> to vector<256x32xbf16>
    %c0_21 = arith.constant 0 : index
    %c0_22 = arith.constant 0 : index
    %24 = vector.load %arg11[%c0_21, %c0_22] : memref<256x32xbf16, #tpu.memory_space<vmem>>, vector<256x32xbf16>
    tpu.vector_store %arg11[%c0_21, %c0_22], %23 {strides = array<i32>} : memref<256x32xbf16, #tpu.memory_space<vmem>>, vector<256x32xbf16>,
    %c0_23 = arith.constant 0 : index
    %c0_24 = arith.constant 0 : index
    %25 = vector.load %arg9[%c0_23, %c0_24] : memref<256x256xbf16, #tpu.memory_space<vmem>>, vector<256x256xbf16>
    %c0_25 = arith.constant 0 : index
    %c0_26 = arith.constant 0 : index
    %26 = vector.load %arg11[%c0_25, %c0_26] : memref<256x32xbf16, #tpu.memory_space<vmem>>, vector<256x32xbf16>
    %cst_27 = arith.constant dense<0.000000e+00> : vector<256x32xf32>
    %27 = tpu.matmul %25, %26, %cst_27 {dimension_numbers = #tpu.dot_dimension_numbers<[1], [0], [0], [1], [0, 0, 1, 1], [], []>} : vector<256x256xbf16>, vector<256x32xbf16>, vector<256x32xf32> -> vector<256x32xf32>
    %28 = arith.truncf %27 : vector<256x32xf32> to vector<256x32xbf16>
    %c0_28 = arith.constant 0 : index
    %c0_29 = arith.constant 0 : index
    %29 = vector.load %arg4[%c0_28, %c0_29] : memref<32x64xbf16, #tpu.memory_space<vmem>>, vector<32x64xbf16>
    %cst_30 = arith.constant dense<0.000000e+00> : vector<256x64xf32>
    %30 = tpu.matmul %28, %29, %cst_30 {dimension_numbers = #tpu.dot_dimension_numbers<[1], [0], [0], [1], [0, 0, 1, 1], [], []>} : vector<256x32xbf16>, vector<32x64xbf16>, vector<256x64xf32> -> vector<256x64xf32>
    %c0_31 = arith.constant 0 : index
    %c0_32 = arith.constant 0 : index
    %31 = vector.load %arg5[%c0_31, %c0_32] : memref<1x64xf32, #tpu.memory_space<vmem>>, vector<1x64xf32>
    %32 = vector.broadcast %31 : vector<1x64xf32> to vector<256x64xf32>
    %33 = arith.addf %30, %32 : vector<256x64xf32>
    %cst_33 = arith.constant 0.000000e+00 : f32
    %34 = vector.broadcast %cst_33 : f32 to vector<256x64xf32>
    %35 = arith.maximumf %33, %34 : vector<256x64xf32>
    %36 = arith.truncf %35 : vector<256x64xf32> to vector<256x64xbf16>
    %c0_34 = arith.constant 0 : index
    %c0_35 = arith.constant 0 : index
    %37 = vector.load %arg12[%c0_34, %c0_35] : memref<256x64xbf16, #tpu.memory_space<vmem>>, vector<256x64xbf16>
    tpu.vector_store %arg12[%c0_34, %c0_35], %36 {strides = array<i32>} : memref<256x64xbf16, #tpu.memory_space<vmem>>, vector<256x64xbf16>,
    %c0_36 = arith.constant 0 : index
    %c0_37 = arith.constant 0 : index
    %38 = vector.load %arg9[%c0_36, %c0_37] : memref<256x256xbf16, #tpu.memory_space<vmem>>, vector<256x256xbf16>
    %c0_38 = arith.constant 0 : index
    %c0_39 = arith.constant 0 : index
    %39 = vector.load %arg12[%c0_38, %c0_39] : memref<256x64xbf16, #tpu.memory_space<vmem>>, vector<256x64xbf16>
    %cst_40 = arith.constant dense<0.000000e+00> : vector<256x64xf32>
    %40 = tpu.matmul %38, %39, %cst_40 {dimension_numbers = #tpu.dot_dimension_numbers<[1], [0], [0], [1], [0, 0, 1, 1], [], []>} : vector<256x256xbf16>, vector<256x64xbf16>, vector<256x64xf32> -> vector<256x64xf32>
    %41 = arith.truncf %40 : vector<256x64xf32> to vector<256x64xbf16>
    %c0_41 = arith.constant 0 : index
    %c0_42 = arith.constant 0 : index
    %42 = vector.load %arg6[%c0_41, %c0_42] : memref<64x128xbf16, #tpu.memory_space<vmem>>, vector<64x128xbf16>
    %cst_43 = arith.constant dense<0.000000e+00> : vector<256x128xf32>
    %43 = tpu.matmul %41, %42, %cst_43 {dimension_numbers = #tpu.dot_dimension_numbers<[1], [0], [0], [1], [0, 0, 1, 1], [], []>} : vector<256x64xbf16>, vector<64x128xbf16>, vector<256x128xf32> -> vector<256x128xf32>
    %c0_44 = arith.constant 0 : index
    %c0_45 = arith.constant 0 : index
    %44 = vector.load %arg7[%c0_44, %c0_45] : memref<1x128xf32, #tpu.memory_space<vmem>>, vector<1x128xf32>
    %45 = vector.broadcast %44 : vector<1x128xf32> to vector<256x128xf32>
    %46 = arith.addf %43, %45 : vector<256x128xf32>
    %c0_46 = arith.constant 0 : index
    %c0_47 = arith.constant 0 : index
    %47 = vector.load %arg8[%c0_46, %c0_47] : memref<256x128xf32, #tpu.memory_space<vmem>>, vector<256x128xf32>
    tpu.vector_store %arg8[%c0_46, %c0_47], %46 {strides = array<i32>} : memref<256x128xf32, #tpu.memory_space<vmem>>, vector<256x128xf32>,
    return
  }
}

</mosaic_0001>

<llo_original>
// kernel: tpu_custom_call.1
$region0: #{tpu_custom_call.1}
  #allocation0 [shape = 'u32[]', space=smem, size = 0x4, offset = 0x4, fixed_abs, tag = 'smem constant byte address 0x4 - core index']
  #allocation1 [shape = 'u32[144,128]{1,0:T(1,128)}', space=vmem, size = 0x12000, scoped, tag = 'internal scratch']
  #allocation2 [shape = 'bf16[256,256]{1,0:T(8,128)(2,1)}', space=vmem, size = 0x20000, scoped, tag = 'scratch operand']
  #allocation3 [shape = 'bf16[256,32]{1,0:T(8,128)(2,1)}', space=vmem, size = 0x10000, scoped, tag = 'scratch operand']
  #allocation4 [shape = 'bf16[256,32]{1,0:T(8,128)(2,1)}', space=vmem, size = 0x10000, scoped, tag = 'scratch operand']
  #allocation5 [shape = 'bf16[256,64]{1,0:T(8,128)(2,1)}', space=vmem, size = 0x10000, scoped, tag = 'scratch operand']
  #allocation6 [shape = 's32[1]{0}', space=sflag, size = 0x4, scoped, tag = 'scratch operand']
  #allocation13 [shape = 's32[]', space=sflag, size = 0x4, offset = 0, fixed_abs, tag = 'sflag constant byte address 0x0 - dummy sync flag']
  %s0 = inlined_call_operand.vmem [shape: bf16[256,256], index: 0, kind: input, shape index: {}]
  %s1 = inlined_call_operand.vmem [shape: f32[256,1], index: 1, kind: input, shape index: {}]
  %s2 = inlined_call_operand.vmem [shape: f32[1,32], index: 2, kind: input, shape index: {}]
  %s3 = inlined_call_operand.vmem [shape: f32[1,32], index: 3, kind: input, shape index: {}]
  %s4 = inlined_call_operand.hbm [shape: bf16[32,64], index: 4, kind: input, shape index: {}]
  %s5 = inlined_call_operand.vmem [shape: f32[1,64], index: 5, kind: input, shape index: {}]
  %s6 = inlined_call_operand.hbm [shape: bf16[64,128], index: 6, kind: input, shape index: {}]
  %s7 = inlined_call_operand.vmem [shape: f32[1,128], index: 7, kind: input, shape index: {}]
  %s8 = inlined_call_operand.hbm [shape: f32[256,128], index: 8, kind: output, shape index: {}]
  %s9 = sld [smem:[#allocation0]]
  $region80: #{tpu_custom_call.1} parent=0
    _
  %s11 = ssub.s32 1, %s9
  %s12 = scalar_select 0, %s11, %s9
  $region1: #{tpu_custom_call.1} parent=0
    #allocation7 [shape = 'u8[8192]{0}', space=vmem, size = 0x2000, scoped, tag = 'input window, operand 4, single buffered']
    #allocation8 [shape = 's32[1]{0}', space=sflag, size = 0x4, scoped, tag = 'scoped memory for tpu_custom_call.1']
    #allocation9 [shape = 's32[1]{0}', space=sflag, size = 0x4, scoped, tag = 'scoped memory for tpu_custom_call.1']
    #allocation10 [shape = 'u8[16384]{0}', space=vmem, size = 0x4000, scoped, tag = 'input window, operand 6, single buffered']
    #allocation11 [shape = 's32[1]{0}', space=sflag, size = 0x4, scoped, tag = 'scoped memory for tpu_custom_call.1']
    #allocation12 [shape = 'u8[131072]{0}', space=vmem, size = 0x20000, scoped, tag = 'output window, operand 0, single buffered']
    %13 = vsyncpa [#allocation8], 0
    %14 = vsyncpa [#allocation11], 0
    %15 = vsyncpa [#allocation9], 0
    // Predicated region
    $region2: #{tpu_custom_call.1} parent=1 // pred_check
      _
    $region3: #{tpu_custom_call.1} parent=1 // pred_check_branch
      %17 = sbr.rel (0) target = $region5
    $region4: #{tpu_custom_call.1} parent=1 // pred_region
      _
    $region5: #{tpu_custom_call.1} parent=1 // pred_fallthru
      _
    // Predicated region
    $region6: #{tpu_custom_call.1} parent=1 // pred_check
      _
    $region7: #{tpu_custom_call.1} parent=1 // pred_check_branch
      %19 = sbr.rel (0) target = $region9
    $region8: #{tpu_custom_call.1} parent=1 // pred_region
      _
    $region9: #{tpu_custom_call.1} parent=1 // pred_fallthru
      _
    // Predicated region
    $region10: #{tpu_custom_call.1} parent=1 // pred_check
      _
    $region11: #{tpu_custom_call.1} parent=1 // pred_check_branch
      %21 = sbr.rel (0) target = $region13
    $region12: #{tpu_custom_call.1} parent=1 // pred_region
      _
    $region13: #{tpu_custom_call.1} parent=1 // pred_fallthru
      _
    // Predicated region
    $region14: #{tpu_custom_call.1} parent=1 // pred_check
      _
    $region15: #{tpu_custom_call.1} parent=1 // pred_check_branch
      %23 = sbr.rel (0) target = $region17
    $region16: #{tpu_custom_call.1} parent=1 // pred_region
      %s25 = ssub.s32 256, 256
      %26 = vsyncadd [#allocation8], %s25
      %s27 = sshll.u32 [#allocation7], 4
      %s28 = int_to_ptr.vmem [resolvable:$true] %s27
      %33 = dma.hbm_to_vmem [thread:$0]  %s4, 256, %s28, [#allocation8], 64, 64, 4
    $region17: #{tpu_custom_call.1} parent=1 // pred_fallthru
      _
    // Predicated region
    $region18: #{tpu_custom_call.1} parent=1 // pred_check
      _
    $region19: #{tpu_custom_call.1} parent=1 // pred_check_branch
      %35 = sbr.rel (0) target = $region21
    $region20: #{tpu_custom_call.1} parent=1 // pred_region
      _
    $region21: #{tpu_custom_call.1} parent=1 // pred_fallthru
      _
    // Predicated region
    $region22: #{tpu_custom_call.1} parent=1 // pred_check
      _
    $region23: #{tpu_custom_call.1} parent=1 // pred_check_branch
      %37 = sbr.rel (0) target = $region25
    $region24: #{tpu_custom_call.1} parent=1 // pred_region
      %s39 = ssub.s32 512, 512
      %40 = vsyncadd [#allocation11], %s39
      %s41 = sshll.u32 [#allocation10], 4
      %s42 = int_to_ptr.vmem [resolvable:$true] %s41
      %47 = dma.hbm_to_vmem [thread:$0]  %s6, 512, %s42, [#allocation11], 64, 64, 4
    $region25: #{tpu_custom_call.1} parent=1 // pred_fallthru
      _
    // Predicated region
    $region26: #{tpu_custom_call.1} parent=1 // pred_check
      _
    $region27: #{tpu_custom_call.1} parent=1 // pred_check_branch
      %49 = sbr.rel (0) target = $region29
    $region28: #{tpu_custom_call.1} parent=1 // pred_region
      _
    $region29: #{tpu_custom_call.1} parent=1 // pred_fallthru
      _
    // Predicated region
    $region30: #{tpu_custom_call.1} parent=1 // pred_check
      _
    $region31: #{tpu_custom_call.1} parent=1 // pred_check_branch
      %51 = sbr.rel (0) target = $region33
    $region32: #{tpu_custom_call.1} parent=1 // pred_region
      %52 = dma.done [#allocation8], 256
    $region33: #{tpu_custom_call.1} parent=1 // pred_fallthru
      _
    // Predicated region
    $region34: #{tpu_custom_call.1} parent=1 // pred_check
      _
    $region35: #{tpu_custom_call.1} parent=1 // pred_check_branch
      %54 = sbr.rel (0) target = $region37
    $region36: #{tpu_custom_call.1} parent=1 // pred_region
      %55 = dma.done [#allocation11], 512
    $region37: #{tpu_custom_call.1} parent=1 // pred_fallthru
      _
    %p58 = scmp.lt.u32.totalorder 256, 8
    %p59 = pneg %p58
    // Predicated region
    $region38: #{tpu_custom_call.1} parent=1 // pred_check
      _
    $region39: #{tpu_custom_call.1} parent=1 // pred_check_branch
      %61 = sbr.rel (%p58) target = $region41
    $region40: #{tpu_custom_call.1} parent=1 // pred_region
      %s77 = sand.u32 256, 7
      %p78 = scmp.eq.s32.totalorder %s77, 0
      // Predicated region
      $region53: #{tpu_custom_call.1} parent=40 // pred_check
        %p79 = pneg %p78
      $region54: #{tpu_custom_call.1} parent=40 // pred_check_branch
        %81 = sbr.rel (%p79) target = $region56
      $region55: #{tpu_custom_call.1} parent=40 // pred_region
        loop: start=0, step=1, limit=1
        $region57: #{tpu_custom_call.1} parent=55 // loop_pre_header
          _
        $region58: #{tpu_custom_call.1} parent=55 // loop_header
          %s83 = sphi 0, %s87
          %p84 = scmp.ge.s32.totalorder %s83, 1
          %s88 = sphi %s0, %s0
          %s89 = sphi [#allocation2], [#allocation2]
        $region59: #{tpu_custom_call.1} parent=55 // loop_header_branch
          %86 = sbr.rel (%p84) target = $region63
        $region60: #{tpu_custom_call.1} parent=55 // loop_body
          %v90 = vld [vmem:[%s88] sm:$0xff]
          %91 = vst [vmem:[%s89] sm:$0xff] %v90
          %v92 = vld [vmem:[%s88 + $0x8] sm:$0xff]
          %93 = vst [vmem:[%s89 + $0x8] sm:$0xff] %v92
          %v94 = vld [vmem:[%s88 + $0x10] sm:$0xff]
          %95 = vst [vmem:[%s89 + $0x10] sm:$0xff] %v94
          %v96 = vld [vmem:[%s88 + $0x18] sm:$0xff]
          %97 = vst [vmem:[%s89 + $0x18] sm:$0xff] %v96
          %v98 = vld [vmem:[%s88 + $0x20] sm:$0xff]
          %99 = vst [vmem:[%s89 + $0x20] sm:$0xff] %v98
          %v100 = vld [vmem:[%s88 + $0x28] sm:$0xff]
          %101 = vst [vmem:[%s89 + $0x28] sm:$0xff] %v100
          %v102 = vld [vmem:[%s88 + $0x30] sm:$0xff]
          %103 = vst [vmem:[%s89 + $0x30] sm:$0xff] %v102
          %v104 = vld [vmem:[%s88 + $0x38] sm:$0xff]
          %105 = vst [vmem:[%s89 + $0x38] sm:$0xff] %v104
          %v106 = vld [vmem:[%s88 + $0x40] sm:$0xff]
          %107 = vst [vmem:[%s89 + $0x40] sm:$0xff] %v106
          %v108 = vld [vmem:[%s88 + $0x48] sm:$0xff]
          %109 = vst [vmem:[%s89 + $0x48] sm:$0xff] %v108
          %v110 = vld [vmem:[%s88 + $0x50] sm:$0xff]
          %111 = vst [vmem:[%s89 + $0x50] sm:$0xff] %v110
          %v112 = vld [vmem:[%s88 + $0x58] sm:$0xff]
          %113 = vst [vmem:[%s89 + $0x58] sm:$0xff] %v112
          %v114 = vld [vmem:[%s88 + $0x60] sm:$0xff]
          %115 = vst [vmem:[%s89 + $0x60] sm:$0xff] %v114
          %v116 = vld [vmem:[%s88 + $0x68] sm:$0xff]
          %117 = vst [vmem:[%s89 + $0x68] sm:$0xff] %v116
          %v118 = vld [vmem:[%s88 + $0x70] sm:$0xff]
          %119 = vst [vmem:[%s89 + $0x70] sm:$0xff] %v118
          %v120 = vld [vmem:[%s88 + $0x78] sm:$0xff]
          %121 = vst [vmem:[%s89 + $0x78] sm:$0xff] %v120
          %v122 = vld [vmem:[%s88 + $0x80] sm:$0xff]
          %123 = vst [vmem:[%s89 + $0x80] sm:$0xff] %v122
          %v124 = vld [vmem:[%s88 + $0x88] sm:$0xff]
          %125 = vst [vmem:[%s89 + $0x88] sm:$0xff] %v124
          %v126 = vld [vmem:[%s88 + $0x90] sm:$0xff]
          %127 = vst [vmem:[%s89 + $0x90] sm:$0xff] %v126
          %v128 = vld [vmem:[%s88 + $0x98] sm:$0xff]
          %129 = vst [vmem:[%s89 + $0x98] sm:$0xff] %v128
          %v130 = vld [vmem:[%s88 + $0xa0] sm:$0xff]
          %131 = vst [vmem:[%s89 + $0xa0] sm:$0xff] %v130
          %v132 = vld [vmem:[%s88 + $0xa8] sm:$0xff]
          %133 = vst [vmem:[%s89 + $0xa8] sm:$0xff] %v132
          %v134 = vld [vmem:[%s88 + $0xb0] sm:$0xff]
          %135 = vst [vmem:[%s89 + $0xb0] sm:$0xff] %v134
          %v136 = vld [vmem:[%s88 + $0xb8] sm:$0xff]
          %137 = vst [vmem:[%s89 + $0xb8] sm:$0xff] %v136
          %v138 = vld [vmem:[%s88 + $0xc0] sm:$0xff]
          %139 = vst [vmem:[%s89 + $0xc0] sm:$0xff] %v138
          %v140 = vld [vmem:[%s88 + $0xc8] sm:$0xff]
          %141 = vst [vmem:[%s89 + $0xc8] sm:$0xff] %v140
          %v142 = vld [vmem:[%s88 + $0xd0] sm:$0xff]
          %143 = vst [vmem:[%s89 + $0xd0] sm:$0xff] %v142
          %v144 = vld [vmem:[%s88 + $0xd8] sm:$0xff]
          %145 = vst [vmem:[%s89 + $0xd8] sm:$0xff] %v144
          %v146 = vld [vmem:[%s88 + $0xe0] sm:$0xff]
          %147 = vst [vmem:[%s89 + $0xe0] sm:$0xff] %v146
          %v148 = vld [vmem:[%s88 + $0xe8] sm:$0xff]
          %149 = vst [vmem:[%s89 + $0xe8] sm:$0xff] %v148
          %v150 = vld [vmem:[%s88 + $0xf0] sm:$0xff]
          %151 = vst [vmem:[%s89 + $0xf0] sm:$0xff] %v150
          %v152 = vld [vmem:[%s88 + $0xf8] sm:$0xff]
          %153 = vst [vmem:[%s89 + $0xf8] sm:$0xff] %v152
        $region61: #{tpu_custom_call.1} parent=55 // loop_footer
          %s87 = sadd.s32 1, %s83
        $region62: #{tpu_custom_call.1} parent=55 // loop_footer_branch
          %82 = sbr.rel target = $region58
        $region63: #{tpu_custom_call.1} parent=55 // loop_exit
          _
      $region56: #{tpu_custom_call.1} parent=40 // pred_fallthru
        _
      %p154 = pneg %p78
      // Predicated region
      $region64: #{tpu_custom_call.1} parent=40 // pred_check
        _
      $region65: #{tpu_custom_call.1} parent=40 // pred_check_branch
        %156 = sbr.rel (%p78) target = $region67
      $region66: #{tpu_custom_call.1} parent=40 // pred_region
        %s157 = sand.u32 256, 7
      $region67: #{tpu_custom_call.1} parent=40 // pred_fallthru
        _
    $region41: #{tpu_custom_call.1} parent=1 // pred_fallthru
      _
    // Predicated region
    $region42: #{tpu_custom_call.1} parent=1 // pred_check
      %p62 = pneg %p58
    $region43: #{tpu_custom_call.1} parent=1 // pred_check_branch
      %64 = sbr.rel (%p62) target = $region45
    $region44: #{tpu_custom_call.1} parent=1 // pred_region
      %s65 = sshll.u32 1, 256
      %s66 = ssub.s32 %s65, 1
      loop: start=0, step=1, limit=1
      $region46: #{tpu_custom_call.1} parent=44 // loop_pre_header
        _
      $region47: #{tpu_custom_call.1} parent=44 // loop_header
        %s68 = sphi 0, %s72
        %p69 = scmp.ge.s32.totalorder %s68, 1
        %s73 = sphi %s0, %s0
        %s74 = sphi [#allocation2], [#allocation2]
      $region48: #{tpu_custom_call.1} parent=44 // loop_header_branch
        %71 = sbr.rel (%p69) target = $region52
      $region49: #{tpu_custom_call.1} parent=44 // loop_body
        %v75 = vld [vmem:[%s73] sm:%s66]
        %76 = vst [vmem:[%s74] sm:%s66] %v75
      $region50: #{tpu_custom_call.1} parent=44 // loop_footer
        %s72 = sadd.s32 1, %s68
      $region51: #{tpu_custom_call.1} parent=44 // loop_footer_branch
        %67 = sbr.rel target = $region47
      $region52: #{tpu_custom_call.1} parent=44 // loop_exit
        _
    $region45: #{tpu_custom_call.1} parent=1 // pred_fallthru
      _
    // Predicated region
    $region68: #{tpu_custom_call.1} parent=1 // pred_check
      _
    $region69: #{tpu_custom_call.1} parent=1 // pred_check_branch
      %160 = sbr.rel (0) target = $region71
    $region70: #{tpu_custom_call.1} parent=1 // pred_region
      %161 = vsyncadd [#allocation6], 4096
    $region71: #{tpu_custom_call.1} parent=1 // pred_fallthru
      _
    %v162 = vld [vmem:[%s1] sm:$0xff]
    %v163 = vld [vmem:[%s1 + $0x8] sm:$0xff]
    %v164 = vld [vmem:[%s1 + $0x10] sm:$0xff]
    %v165 = vld [vmem:[%s1 + $0x18] sm:$0xff]
    %v166 = vld [vmem:[%s1 + $0x20] sm:$0xff]
    %v167 = vld [vmem:[%s1 + $0x28] sm:$0xff]
    %v168 = vld [vmem:[%s1 + $0x30] sm:$0xff]
    %v169 = vld [vmem:[%s1 + $0x38] sm:$0xff]
    %v170 = vld [vmem:[%s1 + $0x40] sm:$0xff]
    %v171 = vld [vmem:[%s1 + $0x48] sm:$0xff]
    %v172 = vld [vmem:[%s1 + $0x50] sm:$0xff]
    %v173 = vld [vmem:[%s1 + $0x58] sm:$0xff]
    %v174 = vld [vmem:[%s1 + $0x60] sm:$0xff]
    %v175 = vld [vmem:[%s1 + $0x68] sm:$0xff]
    %v176 = vld [vmem:[%s1 + $0x70] sm:$0xff]
    %v177 = vld [vmem:[%s1 + $0x78] sm:$0xff]
    %v178 = vld [vmem:[%s1 + $0x80] sm:$0xff]
    %v179 = vld [vmem:[%s1 + $0x88] sm:$0xff]
    %v180 = vld [vmem:[%s1 + $0x90] sm:$0xff]
    %v181 = vld [vmem:[%s1 + $0x98] sm:$0xff]
    %v182 = vld [vmem:[%s1 + $0xa0] sm:$0xff]
    %v183 = vld [vmem:[%s1 + $0xa8] sm:$0xff]
    %v184 = vld [vmem:[%s1 + $0xb0] sm:$0xff]
    %v185 = vld [vmem:[%s1 + $0xb8] sm:$0xff]
    %v186 = vld [vmem:[%s1 + $0xc0] sm:$0xff]
    %v187 = vld [vmem:[%s1 + $0xc8] sm:$0xff]
    %v188 = vld [vmem:[%s1 + $0xd0] sm:$0xff]
    %v189 = vld [vmem:[%s1 + $0xd8] sm:$0xff]
    %v190 = vld [vmem:[%s1 + $0xe0] sm:$0xff]
    %v191 = vld [vmem:[%s1 + $0xe8] sm:$0xff]
    %v192 = vld [vmem:[%s1 + $0xf0] sm:$0xff]
    %v193 = vld [vmem:[%s1 + $0xf8] sm:$0xff]
    %v194 = vld [vmem:[%s2] sm:$0x1]
    %196 = vset.pattern.permute.xlu0 0
    %197 = vperm.xlu0 %196, %v162
    %v198 = vpop.permute.xlu0 %197
    %201 = vset.pattern.permute.xlu0 0
    %202 = vperm.xlu0 %201, %v163
    %v203 = vpop.permute.xlu0 %202
    %206 = vset.pattern.permute.xlu0 0
    %207 = vperm.xlu0 %206, %v164
    %v208 = vpop.permute.xlu0 %207
    %211 = vset.pattern.permute.xlu0 0
    %212 = vperm.xlu0 %211, %v165
    %v213 = vpop.permute.xlu0 %212
    %216 = vset.pattern.permute.xlu0 0
    %217 = vperm.xlu0 %216, %v166
    %v218 = vpop.permute.xlu0 %217
    %221 = vset.pattern.permute.xlu0 0
    %222 = vperm.xlu0 %221, %v167
    %v223 = vpop.permute.xlu0 %222
    %226 = vset.pattern.permute.xlu0 0
    %227 = vperm.xlu0 %226, %v168
    %v228 = vpop.permute.xlu0 %227
    %231 = vset.pattern.permute.xlu0 0
    %232 = vperm.xlu0 %231, %v169
    %v233 = vpop.permute.xlu0 %232
    %236 = vset.pattern.permute.xlu0 0
    %237 = vperm.xlu0 %236, %v170
    %v238 = vpop.permute.xlu0 %237
    %241 = vset.pattern.permute.xlu0 0
    %242 = vperm.xlu0 %241, %v171
    %v243 = vpop.permute.xlu0 %242
    %246 = vset.pattern.permute.xlu0 0
    %247 = vperm.xlu0 %246, %v172
    %v248 = vpop.permute.xlu0 %247
    %251 = vset.pattern.permute.xlu0 0
    %252 = vperm.xlu0 %251, %v173
    %v253 = vpop.permute.xlu0 %252
    %256 = vset.pattern.permute.xlu0 0
    %257 = vperm.xlu0 %256, %v174
    %v258 = vpop.permute.xlu0 %257
    %261 = vset.pattern.permute.xlu0 0
    %262 = vperm.xlu0 %261, %v175
    %v263 = vpop.permute.xlu0 %262
    %266 = vset.pattern.permute.xlu0 0
    %267 = vperm.xlu0 %266, %v176
    %v268 = vpop.permute.xlu0 %267
    %271 = vset.pattern.permute.xlu0 0
    %272 = vperm.xlu0 %271, %v177
    %v273 = vpop.permute.xlu0 %272
    %276 = vset.pattern.permute.xlu0 0
    %277 = vperm.xlu0 %276, %v178
    %v278 = vpop.permute.xlu0 %277
    %281 = vset.pattern.permute.xlu0 0
    %282 = vperm.xlu0 %281, %v179
    %v283 = vpop.permute.xlu0 %282
    %286 = vset.pattern.permute.xlu0 0
    %287 = vperm.xlu0 %286, %v180
    %v288 = vpop.permute.xlu0 %287
    %291 = vset.pattern.permute.xlu0 0
    %292 = vperm.xlu0 %291, %v181
    %v293 = vpop.permute.xlu0 %292
    %296 = vset.pattern.permute.xlu0 0
    %297 = vperm.xlu0 %296, %v182
    %v298 = vpop.permute.xlu0 %297
    %301 = vset.pattern.permute.xlu0 0
    %302 = vperm.xlu0 %301, %v183
    %v303 = vpop.permute.xlu0 %302
    %306 = vset.pattern.permute.xlu0 0
    %307 = vperm.xlu0 %306, %v184
    %v308 = vpop.permute.xlu0 %307
    %311 = vset.pattern.permute.xlu0 0
    %312 = vperm.xlu0 %311, %v185
    %v313 = vpop.permute.xlu0 %312
    %316 = vset.pattern.permute.xlu0 0
    %317 = vperm.xlu0 %316, %v186
    %v318 = vpop.permute.xlu0 %317
    %321 = vset.pattern.permute.xlu0 0
    %322 = vperm.xlu0 %321, %v187
    %v323 = vpop.permute.xlu0 %322
    %326 = vset.pattern.permute.xlu0 0
    %327 = vperm.xlu0 %326, %v188
    %v328 = vpop.permute.xlu0 %327
    %331 = vset.pattern.permute.xlu0 0
    %332 = vperm.xlu0 %331, %v189
    %v333 = vpop.permute.xlu0 %332
    %336 = vset.pattern.permute.xlu0 0
    %337 = vperm.xlu0 %336, %v190
    %v338 = vpop.permute.xlu0 %337
    %341 = vset.pattern.permute.xlu0 0
    %342 = vperm.xlu0 %341, %v191
    %v343 = vpop.permute.xlu0 %342
    %346 = vset.pattern.permute.xlu0 0
    %347 = vperm.xlu0 %346, %v192
    %v348 = vpop.permute.xlu0 %347
    %351 = vset.pattern.permute.xlu0 0
    %352 = vperm.xlu0 %351, %v193
    %v353 = vpop.permute.xlu0 %352
    %v356 = vlaneseq
    %v357 = vshrl.u32 %v356, 7
    %v358 = vsub.s32 0, %v357
    %v359 = vrot.slane %v194, %v358
    %v361 = vmul.f32 %v198, %v359
    %v362 = vmul.f32 %v203, %v359
    %v363 = vmul.f32 %v208, %v359
    %v364 = vmul.f32 %v213, %v359
    %v365 = vmul.f32 %v218, %v359
    %v366 = vmul.f32 %v223, %v359
    %v367 = vmul.f32 %v228, %v359
    %v368 = vmul.f32 %v233, %v359
    %v369 = vmul.f32 %v238, %v359
    %v370 = vmul.f32 %v243, %v359
    %v371 = vmul.f32 %v248, %v359
    %v372 = vmul.f32 %v253, %v359
    %v373 = vmul.f32 %v258, %v359
    %v374 = vmul.f32 %v263, %v359
    %v375 = vmul.f32 %v268, %v359
    %v376 = vmul.f32 %v273, %v359
    %v377 = vmul.f32 %v278, %v359
    %v378 = vmul.f32 %v283, %v359
    %v379 = vmul.f32 %v288, %v359
    %v380 = vmul.f32 %v293, %v359
    %v381 = vmul.f32 %v298, %v359
    %v382 = vmul.f32 %v303, %v359
    %v383 = vmul.f32 %v308, %v359
    %v384 = vmul.f32 %v313, %v359
    %v385 = vmul.f32 %v318, %v359
    %v386 = vmul.f32 %v323, %v359
    %v387 = vmul.f32 %v328, %v359
    %v388 = vmul.f32 %v333, %v359
    %v389 = vmul.f32 %v338, %v359
    %v390 = vmul.f32 %v343, %v359
    %v391 = vmul.f32 %v348, %v359
    %v392 = vmul.f32 %v353, %v359
    %v393 = vpack.c.bf16 %v362, %v361
    %v394 = vpack.c.bf16 %v364, %v363
    %v395 = vpack.c.bf16 %v366, %v365
    %v396 = vpack.c.bf16 %v368, %v367
    %v397 = vpack.c.bf16 %v370, %v369
    %v398 = vpack.c.bf16 %v372, %v371
    %v399 = vpack.c.bf16 %v374, %v373
    %v400 = vpack.c.bf16 %v376, %v375
    %v401 = vpack.c.bf16 %v378, %v377
    %v402 = vpack.c.bf16 %v380, %v379
    %v403 = vpack.c.bf16 %v382, %v381
    %v404 = vpack.c.bf16 %v384, %v383
    %v405 = vpack.c.bf16 %v386, %v385
    %v406 = vpack.c.bf16 %v388, %v387
    %v407 = vpack.c.bf16 %v390, %v389
    %v408 = vpack.c.bf16 %v392, %v391
    %v425 = vunpack.c.l.b16 %v393
    %v426 = vunpack.c.h.b16 %v393
    %v427 = vunpack.c.l.b16 %v394
    %v428 = vunpack.c.h.b16 %v394
    %v429 = vunpack.c.l.b16 %v395
    %v430 = vunpack.c.h.b16 %v395
    %v431 = vunpack.c.l.b16 %v396
    %v432 = vunpack.c.h.b16 %v396
    %v433 = vunpack.c.l.b16 %v397
    %v434 = vunpack.c.h.b16 %v397
    %v435 = vunpack.c.l.b16 %v398
    %v436 = vunpack.c.h.b16 %v398
    %v437 = vunpack.c.l.b16 %v399
    %v438 = vunpack.c.h.b16 %v399
    %v439 = vunpack.c.l.b16 %v400
    %v440 = vunpack.c.h.b16 %v400
    %v441 = vunpack.c.l.b16 %v401
    %v442 = vunpack.c.h.b16 %v401
    %v443 = vunpack.c.l.b16 %v402
    %v444 = vunpack.c.h.b16 %v402
    %v445 = vunpack.c.l.b16 %v403
    %v446 = vunpack.c.h.b16 %v403
    %v447 = vunpack.c.l.b16 %v404
    %v448 = vunpack.c.h.b16 %v404
    %v449 = vunpack.c.l.b16 %v405
    %v450 = vunpack.c.h.b16 %v405
    %v451 = vunpack.c.l.b16 %v406
    %v452 = vunpack.c.h.b16 %v406
    %v453 = vunpack.c.l.b16 %v407
    %v454 = vunpack.c.h.b16 %v407
    %v455 = vunpack.c.l.b16 %v408
    %v456 = vunpack.c.h.b16 %v408
    %v457 = vpack.c.b16 %v425, %v425
    %v458 = vpack.c.b16 %v426, %v426
    %v459 = vpack.c.b16 %v427, %v427
    %v460 = vpack.c.b16 %v428, %v428
    %v461 = vpack.c.b16 %v429, %v429
    %v462 = vpack.c.b16 %v430, %v430
    %v463 = vpack.c.b16 %v431, %v431
    %v464 = vpack.c.b16 %v432, %v432
    %v465 = vpack.c.b16 %v433, %v433
    %v466 = vpack.c.b16 %v434, %v434
    %v467 = vpack.c.b16 %v435, %v435
    %v468 = vpack.c.b16 %v436, %v436
    %v469 = vpack.c.b16 %v437, %v437
    %v470 = vpack.c.b16 %v438, %v438
    %v471 = vpack.c.b16 %v439, %v439
    %v472 = vpack.c.b16 %v440, %v440
    %v473 = vpack.c.b16 %v441, %v441
    %v474 = vpack.c.b16 %v442, %v442
    %v475 = vpack.c.b16 %v443, %v443
    %v476 = vpack.c.b16 %v444, %v444
    %v477 = vpack.c.b16 %v445, %v445
    %v478 = vpack.c.b16 %v446, %v446
    %v479 = vpack.c.b16 %v447, %v447
    %v480 = vpack.c.b16 %v448, %v448
    %v481 = vpack.c.b16 %v449, %v449
    %v482 = vpack.c.b16 %v450, %v450
    %v483 = vpack.c.b16 %v451, %v451
    %v484 = vpack.c.b16 %v452, %v452
    %v485 = vpack.c.b16 %v453, %v453
    %v486 = vpack.c.b16 %v454, %v454
    %v487 = vpack.c.b16 %v455, %v455
    %v488 = vpack.c.b16 %v456, %v456
    %vm521 = vcmask 257024
    %522 = vst.msk [vmem:[#allocation3] sm:$0xf] %vm521, %v457
    %523 = vst.msk [vmem:[#allocation3 + $0x4] sm:$0xf] %vm521, %v458
    %524 = vst.msk [vmem:[#allocation3 + $0x8] sm:$0xf] %vm521, %v459
    %525 = vst.msk [vmem:[#allocation3 + $0xc] sm:$0xf] %vm521, %v460
    %526 = vst.msk [vmem:[#allocation3 + $0x10] sm:$0xf] %vm521, %v461
    %527 = vst.msk [vmem:[#allocation3 + $0x14] sm:$0xf] %vm521, %v462
    %528 = vst.msk [vmem:[#allocation3 + $0x18] sm:$0xf] %vm521, %v463
    %529 = vst.msk [vmem:[#allocation3 + $0x1c] sm:$0xf] %vm521, %v464
    %530 = vst.msk [vmem:[#allocation3 + $0x20] sm:$0xf] %vm521, %v465
    %531 = vst.msk [vmem:[#allocation3 + $0x24] sm:$0xf] %vm521, %v466
    %532 = vst.msk [vmem:[#allocation3 + $0x28] sm:$0xf] %vm521, %v467
    %533 = vst.msk [vmem:[#allocation3 + $0x2c] sm:$0xf] %vm521, %v468
    %534 = vst.msk [vmem:[#allocation3 + $0x30] sm:$0xf] %vm521, %v469
    %535 = vst.msk [vmem:[#allocation3 + $0x34] sm:$0xf] %vm521, %v470
    %536 = vst.msk [vmem:[#allocation3 + $0x38] sm:$0xf] %vm521, %v471
    %537 = vst.msk [vmem:[#allocation3 + $0x3c] sm:$0xf] %vm521, %v472
    %538 = vst.msk [vmem:[#allocation3 + $0x40] sm:$0xf] %vm521, %v473
    %539 = vst.msk [vmem:[#allocation3 + $0x44] sm:$0xf] %vm521, %v474
    %540 = vst.msk [vmem:[#allocation3 + $0x48] sm:$0xf] %vm521, %v475
    %541 = vst.msk [vmem:[#allocation3 + $0x4c] sm:$0xf] %vm521, %v476
    %542 = vst.msk [vmem:[#allocation3 + $0x50] sm:$0xf] %vm521, %v477
    %543 = vst.msk [vmem:[#allocation3 + $0x54] sm:$0xf] %vm521, %v478
    %544 = vst.msk [vmem:[#allocation3 + $0x58] sm:$0xf] %vm521, %v479
    %545 = vst.msk [vmem:[#allocation3 + $0x5c] sm:$0xf] %vm521, %v480
    %546 = vst.msk [vmem:[#allocation3 + $0x60] sm:$0xf] %vm521, %v481
    %547 = vst.msk [vmem:[#allocation3 + $0x64] sm:$0xf] %vm521, %v482
    %548 = vst.msk [vmem:[#allocation3 + $0x68] sm:$0xf] %vm521, %v483
    %549 = vst.msk [vmem:[#allocation3 + $0x6c] sm:$0xf] %vm521, %v484
    %550 = vst.msk [vmem:[#allocation3 + $0x70] sm:$0xf] %vm521, %v485
    %551 = vst.msk [vmem:[#allocation3 + $0x74] sm:$0xf] %vm521, %v486
    %552 = vst.msk [vmem:[#allocation3 + $0x78] sm:$0xf] %vm521, %v487
    %553 = vst.msk [vmem:[#allocation3 + $0x7c] sm:$0xf] %vm521, %v488
    %s554 = smul.u32 4, 32
    %s555 = smul.u32 %s554, 2
    %s556 = sshll.u32 %s555, 4
    %557 = dma.done [#allocation6], %s556
    %v558 = vld [vmem:[#allocation2] sm:$0xff]
    %v559 = vld [vmem:[#allocation2 + $0x8] sm:$0xff]
    %v560 = vld [vmem:[#allocation2 + $0x10] sm:$0xff]
    %v561 = vld [vmem:[#allocation2 + $0x18] sm:$0xff]
    %v562 = vld [vmem:[#allocation2 + $0x20] sm:$0xff]
    %v563 = vld [vmem:[#allocation2 + $0x28] sm:$0xff]
    %v564 = vld [vmem:[#allocation2 + $0x30] sm:$0xff]
    %v565 = vld [vmem:[#allocation2 + $0x38] sm:$0xff]
    %v566 = vld [vmem:[#allocation2 + $0x40] sm:$0xff]
    %v567 = vld [vmem:[#allocation2 + $0x48] sm:$0xff]
    %v568 = vld [vmem:[#allocation2 + $0x50] sm:$0xff]
    %v569 = vld [vmem:[#allocation2 + $0x58] sm:$0xff]
    %v570 = vld [vmem:[#allocation2 + $0x60] sm:$0xff]
    %v571 = vld [vmem:[#allocation2 + $0x68] sm:$0xff]
    %v572 = vld [vmem:[#allocation2 + $0x70] sm:$0xff]
    %v573 = vld [vmem:[#allocation2 + $0x78] sm:$0xff]
    %v574 = vld [vmem:[#allocation2 + $0x80] sm:$0xff]
    %v575 = vld [vmem:[#allocation2 + $0x88] sm:$0xff]
    %v576 = vld [vmem:[#allocation2 + $0x90] sm:$0xff]
    %v577 = vld [vmem:[#allocation2 + $0x98] sm:$0xff]
    %v578 = vld [vmem:[#allocation2 + $0xa0] sm:$0xff]
    %v579 = vld [vmem:[#allocation2 + $0xa8] sm:$0xff]
    %v580 = vld [vmem:[#allocation2 + $0xb0] sm:$0xff]
    %v581 = vld [vmem:[#allocation2 + $0xb8] sm:$0xff]
    %v582 = vld [vmem:[#allocation2 + $0xc0] sm:$0xff]
    %v583 = vld [vmem:[#allocation2 + $0xc8] sm:$0xff]
    %v584 = vld [vmem:[#allocation2 + $0xd0] sm:$0xff]
    %v585 = vld [vmem:[#allocation2 + $0xd8] sm:$0xff]
    %v586 = vld [vmem:[#allocation2 + $0xe0] sm:$0xff]
    %v587 = vld [vmem:[#allocation2 + $0xe8] sm:$0xff]
    %v588 = vld [vmem:[#allocation2 + $0xf0] sm:$0xff]
    %v589 = vld [vmem:[#allocation2 + $0xf8] sm:$0xff]
    %v590 = vld [vmem:[#allocation3] sm:$0xf]
    %v591 = vld [vmem:[#allocation3 + $0x4] sm:$0xf]
    %v592 = vld [vmem:[#allocation3 + $0x8] sm:$0xf]
    %v593 = vld [vmem:[#allocation3 + $0xc] sm:$0xf]
    %v594 = vld [vmem:[#allocation3 + $0x10] sm:$0xf]
    %v595 = vld [vmem:[#allocation3 + $0x14] sm:$0xf]
    %v596 = vld [vmem:[#allocation3 + $0x18] sm:$0xf]
    %v597 = vld [vmem:[#allocation3 + $0x1c] sm:$0xf]
    %v598 = vld [vmem:[#allocation3 + $0x20] sm:$0xf]
    %v599 = vld [vmem:[#allocation3 + $0x24] sm:$0xf]
    %v600 = vld [vmem:[#allocation3 + $0x28] sm:$0xf]
    %v601 = vld [vmem:[#allocation3 + $0x2c] sm:$0xf]
    %v602 = vld [vmem:[#allocation3 + $0x30] sm:$0xf]
    %v603 = vld [vmem:[#allocation3 + $0x34] sm:$0xf]
    %v604 = vld [vmem:[#allocation3 + $0x38] sm:$0xf]
    %v605 = vld [vmem:[#allocation3 + $0x3c] sm:$0xf]
    %v606 = vld [vmem:[#allocation3 + $0x40] sm:$0xf]
    %v607 = vld [vmem:[#allocation3 + $0x44] sm:$0xf]
    %v608 = vld [vmem:[#allocation3 + $0x48] sm:$0xf]
    %v609 = vld [vmem:[#allocation3 + $0x4c] sm:$0xf]
    %v610 = vld [vmem:[#allocation3 + $0x50] sm:$0xf]
    %v611 = vld [vmem:[#allocation3 + $0x54] sm:$0xf]
    %v612 = vld [vmem:[#allocation3 + $0x58] sm:$0xf]
    %v613 = vld [vmem:[#allocation3 + $0x5c] sm:$0xf]
    %v614 = vld [vmem:[#allocation3 + $0x60] sm:$0xf]
    %v615 = vld [vmem:[#allocation3 + $0x64] sm:$0xf]
    %v616 = vld [vmem:[#allocation3 + $0x68] sm:$0xf]
    %v617 = vld [vmem:[#allocation3 + $0x6c] sm:$0xf]
    %v618 = vld [vmem:[#allocation3 + $0x70] sm:$0xf]
    %v619 = vld [vmem:[#allocation3 + $0x74] sm:$0xf]
    %v620 = vld [vmem:[#allocation3 + $0x78] sm:$0xf]
    %v621 = vld [vmem:[#allocation3 + $0x7c] sm:$0xf]
    %v622 = vld [vmem:[%s3] sm:$0x1]
    %v624 = vlaneseq
    %v625 = vshrl.u32 %v624, 7
    %v626 = vsub.s32 0, %v625
    %v627 = vrot.slane %v622, %v626
    %v661 = vunpack.c.l.b16 %v558
    %v662 = vunpack.c.h.b16 %v558
    %v663 = vunpack.c.l.b16 %v559
    %v664 = vunpack.c.h.b16 %v559
    %v665 = vunpack.c.l.b16 %v560
    %v666 = vunpack.c.h.b16 %v560
    %v667 = vunpack.c.l.b16 %v561
    %v668 = vunpack.c.h.b16 %v561
    %v669 = vunpack.c.l.b16 %v562
    %v670 = vunpack.c.h.b16 %v562
    %v671 = vunpack.c.l.b16 %v563
    %v672 = vunpack.c.h.b16 %v563
    %v673 = vunpack.c.l.b16 %v564
    %v674 = vunpack.c.h.b16 %v564
    %v675 = vunpack.c.l.b16 %v565
    %v676 = vunpack.c.h.b16 %v565
    %v677 = vunpack.c.l.b16 %v566
    %v678 = vunpack.c.h.b16 %v566
    %v679 = vunpack.c.l.b16 %v567
    %v680 = vunpack.c.h.b16 %v567
    %v681 = vunpack.c.l.b16 %v568
    %v682 = vunpack.c.h.b16 %v568
    %v683 = vunpack.c.l.b16 %v569
    %v684 = vunpack.c.h.b16 %v569
    %v685 = vunpack.c.l.b16 %v570
    %v686 = vunpack.c.h.b16 %v570
    %v687 = vunpack.c.l.b16 %v571
    %v688 = vunpack.c.h.b16 %v571
    %v689 = vunpack.c.l.b16 %v572
    %v690 = vunpack.c.h.b16 %v572
    %v691 = vunpack.c.l.b16 %v573
    %v692 = vunpack.c.h.b16 %v573
    %v693 = vunpack.c.l.b16 %v574
    %v694 = vunpack.c.h.b16 %v574
    %v695 = vunpack.c.l.b16 %v575
    %v696 = vunpack.c.h.b16 %v575
    %v697 = vunpack.c.l.b16 %v576
    %v698 = vunpack.c.h.b16 %v576
    %v699 = vunpack.c.l.b16 %v577
    %v700 = vunpack.c.h.b16 %v577
    %v701 = vunpack.c.l.b16 %v578
    %v702 = vunpack.c.h.b16 %v578
    %v703 = vunpack.c.l.b16 %v579
    %v704 = vunpack.c.h.b16 %v579
    %v705 = vunpack.c.l.b16 %v580
    %v706 = vunpack.c.h.b16 %v580
    %v707 = vunpack.c.l.b16 %v581
    %v708 = vunpack.c.h.b16 %v581
    %v709 = vunpack.c.l.b16 %v582
    %v710 = vunpack.c.h.b16 %v582
    %v711 = vunpack.c.l.b16 %v583
    %v712 = vunpack.c.h.b16 %v583
    %v713 = vunpack.c.l.b16 %v584
    %v714 = vunpack.c.h.b16 %v584
    %v715 = vunpack.c.l.b16 %v585
    %v716 = vunpack.c.h.b16 %v585
    %v717 = vunpack.c.l.b16 %v586
    %v718 = vunpack.c.h.b16 %v586
    %v719 = vunpack.c.l.b16 %v587
    %v720 = vunpack.c.h.b16 %v587
    %v721 = vunpack.c.l.b16 %v588
    %v722 = vunpack.c.h.b16 %v588
    %v723 = vunpack.c.l.b16 %v589
    %v724 = vunpack.c.h.b16 %v589
    %v725 = vpack.c.b16 %v663, %v661
    %v726 = vpack.c.b16 %v664, %v662
    %v727 = vpack.c.b16 %v667, %v665
    %v728 = vpack.c.b16 %v668, %v666
    %v729 = vpack.c.b16 %v671, %v669
    %v730 = vpack.c.b16 %v672, %v670
    %v731 = vpack.c.b16 %v675, %v673
    %v732 = vpack.c.b16 %v676, %v674
    %v733 = vpack.c.b16 %v679, %v677
    %v734 = vpack.c.b16 %v680, %v678
    %v735 = vpack.c.b16 %v683, %v681
    %v736 = vpack.c.b16 %v684, %v682
    %v737 = vpack.c.b16 %v687, %v685
    %v738 = vpack.c.b16 %v688, %v686
    %v739 = vpack.c.b16 %v691, %v689
    %v740 = vpack.c.b16 %v692, %v690
    %v741 = vpack.c.b16 %v695, %v693
    %v742 = vpack.c.b16 %v696, %v694
    %v743 = vpack.c.b16 %v699, %v697
    %v744 = vpack.c.b16 %v700, %v698
    %v745 = vpack.c.b16 %v703, %v701
    %v746 = vpack.c.b16 %v704, %v702
    %v747 = vpack.c.b16 %v707, %v705
    %v748 = vpack.c.b16 %v708, %v706
    %v749 = vpack.c.b16 %v711, %v709
    %v750 = vpack.c.b16 %v712, %v710
    %v751 = vpack.c.b16 %v715, %v713
    %v752 = vpack.c.b16 %v716, %v714
    %v753 = vpack.c.b16 %v719, %v717
    %v754 = vpack.c.b16 %v720, %v718
    %v755 = vpack.c.b16 %v723, %v721
    %v756 = vpack.c.b16 %v724, %v722
    %v821 = vunpack.c.l.b16 %v590
    %v822 = vunpack.c.l.b16 %v591
    %v823 = vunpack.c.l.b16 %v592
    %v824 = vunpack.c.l.b16 %v593
    %v825 = vunpack.c.l.b16 %v594
    %v826 = vunpack.c.l.b16 %v595
    %v827 = vunpack.c.l.b16 %v596
    %v828 = vunpack.c.l.b16 %v597
    %v829 = vunpack.c.l.b16 %v598
    %v830 = vunpack.c.l.b16 %v599
    %v831 = vunpack.c.l.b16 %v600
    %v832 = vunpack.c.l.b16 %v601
    %v833 = vunpack.c.l.b16 %v602
    %v834 = vunpack.c.l.b16 %v603
    %v835 = vunpack.c.l.b16 %v604
    %v836 = vunpack.c.l.b16 %v605
    %v837 = vunpack.c.l.b16 %v606
    %v838 = vunpack.c.l.b16 %v607
    %v839 = vunpack.c.l.b16 %v608
    %v840 = vunpack.c.l.b16 %v609
    %v841 = vunpack.c.l.b16 %v610
    %v842 = vunpack.c.l.b16 %v611
    %v843 = vunpack.c.l.b16 %v612
    %v844 = vunpack.c.l.b16 %v613
    %v845 = vunpack.c.l.b16 %v614
    %v846 = vunpack.c.l.b16 %v615
    %v847 = vunpack.c.l.b16 %v616
    %v848 = vunpack.c.l.b16 %v617
    %v849 = vunpack.c.l.b16 %v618
    %v850 = vunpack.c.l.b16 %v619
    %v851 = vunpack.c.l.b16 %v620
    %v852 = vunpack.c.l.b16 %v621
    %v853 = vpack.c.b16 %v822, %v821
    %v854 = vpack.c.b16 %v824, %v823
    %v855 = vpack.c.b16 %v826, %v825
    %v856 = vpack.c.b16 %v828, %v827
    %v857 = vpack.c.b16 %v830, %v829
    %v858 = vpack.c.b16 %v832, %v831
    %v859 = vpack.c.b16 %v834, %v833
    %v860 = vpack.c.b16 %v836, %v835
    %v861 = vpack.c.b16 %v838, %v837
    %v862 = vpack.c.b16 %v840, %v839
    %v863 = vpack.c.b16 %v842, %v841
    %v864 = vpack.c.b16 %v844, %v843
    %v865 = vpack.c.b16 %v846, %v845
    %v866 = vpack.c.b16 %v848, %v847
    %v867 = vpack.c.b16 %v850, %v849
    %v868 = vpack.c.b16 %v852, %v851
    %885 = vmatprep.subr.bf16.mxu0 0
    %886 = vmatpush1.bf16.msra.mxu0 %v860
    %887 = vmatprep.subr.bf16.mxu0 0
    %888 = vmatpush1.bf16.msra.mxu0 %v859
    %889 = vmatprep.subr.bf16.mxu0 0
    %890 = vmatpush1.bf16.msra.mxu0 %v858
    %891 = vmatprep.subr.bf16.mxu0 0
    %892 = vmatpush1.bf16.msra.mxu0 %v857
    %893 = vmatprep.subr.bf16.mxu0 0
    %894 = vmatpush1.bf16.msra.mxu0 %v856
    %895 = vmatprep.subr.bf16.mxu0 0
    %896 = vmatpush1.bf16.msra.mxu0 %v855
    %897 = vmatprep.subr.bf16.mxu0 0
    %898 = vmatpush1.bf16.msra.mxu0 %v854
    %899 = vmatprep.subr.bf16.mxu0 0
    %900 = vmatpush1.bf16.msra.mxu0 %v853
    %901 = vmatprep.subr.bf16.mxu0 0
    %902 = vmatpush2.bf16.msra.mxu0 %v868
    %903 = vmatprep.subr.bf16.mxu0 0
    %904 = vmatpush2.bf16.msra.mxu0 %v867
    %905 = vmatprep.subr.bf16.mxu0 0
    %906 = vmatpush2.bf16.msra.mxu0 %v866
    %907 = vmatprep.subr.bf16.mxu0 0
    %908 = vmatpush2.bf16.msra.mxu0 %v865
    %909 = vmatprep.subr.bf16.mxu0 0
    %910 = vmatpush2.bf16.msra.mxu0 %v864
    %911 = vmatprep.subr.bf16.mxu0 0
    %912 = vmatpush2.bf16.msra.mxu0 %v863
    %913 = vmatprep.subr.bf16.mxu0 0
    %914 = vmatpush2.bf16.msra.mxu0 %v862
    %915 = vmatprep.subr.bf16.mxu0 0
    %916 = vmatpush2.bf16.msra.mxu0 %v861
    %917 = vmatprep.mubr.bf16.mxu0 %v726
    %918 = vmatmul.mubr.bf16.gmra.mxu0 %v725
    %v919 = vpop.f32.mrf.mxu0
    %v920 = vadd.f32 %v627, %v919
    %v921 = vpop.f32.mrf.mxu0
    %v922 = vpop.f32.mrf.mxu0
    %v923 = vadd.f32 %v627, %v922
    %v924 = vpop.f32.mrf.mxu0
    %925 = vmatprep.mubr.bf16.mxu0 %v728
    %926 = vmatmul.mubr.bf16.gmra.mxu0 %v727
    %v927 = vpop.f32.mrf.mxu0
    %v928 = vadd.f32 %v627, %v927
    %v929 = vpop.f32.mrf.mxu0
    %v930 = vpop.f32.mrf.mxu0
    %v931 = vadd.f32 %v627, %v930
    %v932 = vpop.f32.mrf.mxu0
    %933 = vmatprep.mubr.bf16.mxu0 %v730
    %934 = vmatmul.mubr.bf16.gmra.mxu0 %v729
    %v935 = vpop.f32.mrf.mxu0
    %v936 = vadd.f32 %v627, %v935
    %v937 = vpop.f32.mrf.mxu0
    %v938 = vpop.f32.mrf.mxu0
    %v939 = vadd.f32 %v627, %v938
    %v940 = vpop.f32.mrf.mxu0
    %941 = vmatprep.mubr.bf16.mxu0 %v732
    %942 = vmatmul.mubr.bf16.gmra.mxu0 %v731
    %v943 = vpop.f32.mrf.mxu0
    %v944 = vadd.f32 %v627, %v943
    %v945 = vpop.f32.mrf.mxu0
    %v946 = vpop.f32.mrf.mxu0
    %v947 = vadd.f32 %v627, %v946
    %v948 = vpop.f32.mrf.mxu0
    %949 = vmatprep.mubr.bf16.mxu0 %v734
    %950 = vmatmul.mubr.bf16.gmra.mxu0 %v733
    %v951 = vpop.f32.mrf.mxu0
    %v952 = vadd.f32 %v627, %v951
    %v953 = vpop.f32.mrf.mxu0
    %v954 = vpop.f32.mrf.mxu0
    %v955 = vadd.f32 %v627, %v954
    %v956 = vpop.f32.mrf.mxu0
    %957 = vmatprep.mubr.bf16.mxu0 %v736
    %958 = vmatmul.mubr.bf16.gmra.mxu0 %v735
    %v959 = vpop.f32.mrf.mxu0
    %v960 = vadd.f32 %v627, %v959
    %v961 = vpop.f32.mrf.mxu0
    %v962 = vpop.f32.mrf.mxu0
    %v963 = vadd.f32 %v627, %v962
    %v964 = vpop.f32.mrf.mxu0
    %965 = vmatprep.mubr.bf16.mxu0 %v738
    %966 = vmatmul.mubr.bf16.gmra.mxu0 %v737
    %v967 = vpop.f32.mrf.mxu0
    %v968 = vadd.f32 %v627, %v967
    %v969 = vpop.f32.mrf.mxu0
    %v970 = vpop.f32.mrf.mxu0
    %v971 = vadd.f32 %v627, %v970
    %v972 = vpop.f32.mrf.mxu0
    %973 = vmatprep.mubr.bf16.mxu0 %v740
    %974 = vmatmul.mubr.bf16.gmra.mxu0 %v739
    %v975 = vpop.f32.mrf.mxu0
    %v976 = vadd.f32 %v627, %v975
    %v977 = vpop.f32.mrf.mxu0
    %v978 = vpop.f32.mrf.mxu0
    %v979 = vadd.f32 %v627, %v978
    %v980 = vpop.f32.mrf.mxu0
    %981 = vmatprep.mubr.bf16.mxu0 %v742
    %982 = vmatmul.mubr.bf16.gmra.mxu0 %v741
    %v983 = vpop.f32.mrf.mxu0
    %v984 = vadd.f32 %v627, %v983
    %v985 = vpop.f32.mrf.mxu0
    %v986 = vpop.f32.mrf.mxu0
    %v987 = vadd.f32 %v627, %v986
    %v988 = vpop.f32.mrf.mxu0
    %989 = vmatprep.mubr.bf16.mxu0 %v744
    %990 = vmatmul.mubr.bf16.gmra.mxu0 %v743
    %v991 = vpop.f32.mrf.mxu0
    %v992 = vadd.f32 %v627, %v991
    %v993 = vpop.f32.mrf.mxu0
    %v994 = vpop.f32.mrf.mxu0
    %v995 = vadd.f32 %v627, %v994
    %v996 = vpop.f32.mrf.mxu0
    %997 = vmatprep.mubr.bf16.mxu0 %v746
    %998 = vmatmul.mubr.bf16.gmra.mxu0 %v745
    %v999 = vpop.f32.mrf.mxu0
    %v1000 = vadd.f32 %v627, %v999
    %v1001 = vpop.f32.mrf.mxu0
    %v1002 = vpop.f32.mrf.mxu0
    %v1003 = vadd.f32 %v627, %v1002
    %v1004 = vpop.f32.mrf.mxu0
    %1005 = vmatprep.mubr.bf16.mxu0 %v748
    %1006 = vmatmul.mubr.bf16.gmra.mxu0 %v747
    %v1007 = vpop.f32.mrf.mxu0
    %v1008 = vadd.f32 %v627, %v1007
    %v1009 = vpop.f32.mrf.mxu0
    %v1010 = vpop.f32.mrf.mxu0
    %v1011 = vadd.f32 %v627, %v1010
    %v1012 = vpop.f32.mrf.mxu0
    %1013 = vmatprep.mubr.bf16.mxu0 %v750
    %1014 = vmatmul.mubr.bf16.gmra.mxu0 %v749
    %v1015 = vpop.f32.mrf.mxu0
    %v1016 = vadd.f32 %v627, %v1015
    %v1017 = vpop.f32.mrf.mxu0
    %v1018 = vpop.f32.mrf.mxu0
    %v1019 = vadd.f32 %v627, %v1018
    %v1020 = vpop.f32.mrf.mxu0
    %1021 = vmatprep.mubr.bf16.mxu0 %v752
    %1022 = vmatmul.mubr.bf16.gmra.mxu0 %v751
    %v1023 = vpop.f32.mrf.mxu0
    %v1024 = vadd.f32 %v627, %v1023
    %v1025 = vpop.f32.mrf.mxu0
    %v1026 = vpop.f32.mrf.mxu0
    %v1027 = vadd.f32 %v627, %v1026
    %v1028 = vpop.f32.mrf.mxu0
    %1029 = vmatprep.mubr.bf16.mxu0 %v754
    %1030 = vmatmul.mubr.bf16.gmra.mxu0 %v753
    %v1031 = vpop.f32.mrf.mxu0
    %v1032 = vadd.f32 %v627, %v1031
    %v1033 = vpop.f32.mrf.mxu0
    %v1034 = vpop.f32.mrf.mxu0
    %v1035 = vadd.f32 %v627, %v1034
    %v1036 = vpop.f32.mrf.mxu0
    %1037 = vmatprep.mubr.bf16.mxu0 %v756
    %1038 = vmatmul.mubr.bf16.gmra.mxu0 %v755
    %v1039 = vpop.f32.mrf.mxu0
    %v1040 = vadd.f32 %v627, %v1039
    %v1041 = vpop.f32.mrf.mxu0
    %v1042 = vpop.f32.mrf.mxu0
    %v1043 = vadd.f32 %v627, %v1042
    %v1044 = vpop.f32.mrf.mxu0
    %1045 = vdwg.mxu0
    %v1046 = vmax.f32 %v920, 0.0
    %v1047 = vmax.f32 %v923, 0.0
    %v1048 = vmax.f32 %v928, 0.0
    %v1049 = vmax.f32 %v931, 0.0
    %v1050 = vmax.f32 %v936, 0.0
    %v1051 = vmax.f32 %v939, 0.0
    %v1052 = vmax.f32 %v944, 0.0
    %v1053 = vmax.f32 %v947, 0.0
    %v1054 = vmax.f32 %v952, 0.0
    %v1055 = vmax.f32 %v955, 0.0
    %v1056 = vmax.f32 %v960, 0.0
    %v1057 = vmax.f32 %v963, 0.0
    %v1058 = vmax.f32 %v968, 0.0
    %v1059 = vmax.f32 %v971, 0.0
    %v1060 = vmax.f32 %v976, 0.0
    %v1061 = vmax.f32 %v979, 0.0
    %v1062 = vmax.f32 %v984, 0.0
    %v1063 = vmax.f32 %v987, 0.0
    %v1064 = vmax.f32 %v992, 0.0
    %v1065 = vmax.f32 %v995, 0.0
    %v1066 = vmax.f32 %v1000, 0.0
    %v1067 = vmax.f32 %v1003, 0.0
    %v1068 = vmax.f32 %v1008, 0.0
    %v1069 = vmax.f32 %v1011, 0.0
    %v1070 = vmax.f32 %v1016, 0.0
    %v1071 = vmax.f32 %v1019, 0.0
    %v1072 = vmax.f32 %v1024, 0.0
    %v1073 = vmax.f32 %v1027, 0.0
    %v1074 = vmax.f32 %v1032, 0.0
    %v1075 = vmax.f32 %v1035, 0.0
    %v1076 = vmax.f32 %v1040, 0.0
    %v1077 = vmax.f32 %v1043, 0.0
    %v1078 = vpack.c.bf16 %v1047, %v1046
    %v1079 = vpack.c.bf16 %v1049, %v1048
    %v1080 = vpack.c.bf16 %v1051, %v1050
    %v1081 = vpack.c.bf16 %v1053, %v1052
    %v1082 = vpack.c.bf16 %v1055, %v1054
    %v1083 = vpack.c.bf16 %v1057, %v1056
    %v1084 = vpack.c.bf16 %v1059, %v1058
    %v1085 = vpack.c.bf16 %v1061, %v1060
    %v1086 = vpack.c.bf16 %v1063, %v1062
    %v1087 = vpack.c.bf16 %v1065, %v1064
    %v1088 = vpack.c.bf16 %v1067, %v1066
    %v1089 = vpack.c.bf16 %v1069, %v1068
    %v1090 = vpack.c.bf16 %v1071, %v1070
    %v1091 = vpack.c.bf16 %v1073, %v1072
    %v1092 = vpack.c.bf16 %v1075, %v1074
    %v1093 = vpack.c.bf16 %v1077, %v1076
    %v1110 = vunpack.c.l.b16 %v1078
    %v1111 = vunpack.c.h.b16 %v1078
    %v1112 = vunpack.c.l.b16 %v1079
    %v1113 = vunpack.c.h.b16 %v1079
    %v1114 = vunpack.c.l.b16 %v1080
    %v1115 = vunpack.c.h.b16 %v1080
    %v1116 = vunpack.c.l.b16 %v1081
    %v1117 = vunpack.c.h.b16 %v1081
    %v1118 = vunpack.c.l.b16 %v1082
    %v1119 = vunpack.c.h.b16 %v1082
    %v1120 = vunpack.c.l.b16 %v1083
    %v1121 = vunpack.c.h.b16 %v1083
    %v1122 = vunpack.c.l.b16 %v1084
    %v1123 = vunpack.c.h.b16 %v1084
    %v1124 = vunpack.c.l.b16 %v1085
    %v1125 = vunpack.c.h.b16 %v1085
    %v1126 = vunpack.c.l.b16 %v1086
    %v1127 = vunpack.c.h.b16 %v1086
    %v1128 = vunpack.c.l.b16 %v1087
    %v1129 = vunpack.c.h.b16 %v1087
    %v1130 = vunpack.c.l.b16 %v1088
    %v1131 = vunpack.c.h.b16 %v1088
    %v1132 = vunpack.c.l.b16 %v1089
    %v1133 = vunpack.c.h.b16 %v1089
    %v1134 = vunpack.c.l.b16 %v1090
    %v1135 = vunpack.c.h.b16 %v1090
    %v1136 = vunpack.c.l.b16 %v1091
    %v1137 = vunpack.c.h.b16 %v1091
    %v1138 = vunpack.c.l.b16 %v1092
    %v1139 = vunpack.c.h.b16 %v1092
    %v1140 = vunpack.c.l.b16 %v1093
    %v1141 = vunpack.c.h.b16 %v1093
    %v1142 = vpack.c.b16 %v1110, %v1110
    %v1143 = vpack.c.b16 %v1111, %v1111
    %v1144 = vpack.c.b16 %v1112, %v1112
    %v1145 = vpack.c.b16 %v1113, %v1113
    %v1146 = vpack.c.b16 %v1114, %v1114
    %v1147 = vpack.c.b16 %v1115, %v1115
    %v1148 = vpack.c.b16 %v1116, %v1116
    %v1149 = vpack.c.b16 %v1117, %v1117
    %v1150 = vpack.c.b16 %v1118, %v1118
    %v1151 = vpack.c.b16 %v1119, %v1119
    %v1152 = vpack.c.b16 %v1120, %v1120
    %v1153 = vpack.c.b16 %v1121, %v1121
    %v1154 = vpack.c.b16 %v1122, %v1122
    %v1155 = vpack.c.b16 %v1123, %v1123
    %v1156 = vpack.c.b16 %v1124, %v1124
    %v1157 = vpack.c.b16 %v1125, %v1125
    %v1158 = vpack.c.b16 %v1126, %v1126
    %v1159 = vpack.c.b16 %v1127, %v1127
    %v1160 = vpack.c.b16 %v1128, %v1128
    %v1161 = vpack.c.b16 %v1129, %v1129
    %v1162 = vpack.c.b16 %v1130, %v1130
    %v1163 = vpack.c.b16 %v1131, %v1131
    %v1164 = vpack.c.b16 %v1132, %v1132
    %v1165 = vpack.c.b16 %v1133, %v1133
    %v1166 = vpack.c.b16 %v1134, %v1134
    %v1167 = vpack.c.b16 %v1135, %v1135
    %v1168 = vpack.c.b16 %v1136, %v1136
    %v1169 = vpack.c.b16 %v1137, %v1137
    %v1170 = vpack.c.b16 %v1138, %v1138
    %v1171 = vpack.c.b16 %v1139, %v1139
    %v1172 = vpack.c.b16 %v1140, %v1140
    %v1173 = vpack.c.b16 %v1141, %v1141
    %1206 = vst.msk [vmem:[#allocation4] sm:$0xf] %vm521, %v1142
    %1207 = vst.msk [vmem:[#allocation4 + $0x4] sm:$0xf] %vm521, %v1143
    %1208 = vst.msk [vmem:[#allocation4 + $0x8] sm:$0xf] %vm521, %v1144
    %1209 = vst.msk [vmem:[#allocation4 + $0xc] sm:$0xf] %vm521, %v1145
    %1210 = vst.msk [vmem:[#allocation4 + $0x10] sm:$0xf] %vm521, %v1146
    %1211 = vst.msk [vmem:[#allocation4 + $0x14] sm:$0xf] %vm521, %v1147
    %1212 = vst.msk [vmem:[#allocation4 + $0x18] sm:$0xf] %vm521, %v1148
    %1213 = vst.msk [vmem:[#allocation4 + $0x1c] sm:$0xf] %vm521, %v1149
    %1214 = vst.msk [vmem:[#allocation4 + $0x20] sm:$0xf] %vm521, %v1150
    %1215 = vst.msk [vmem:[#allocation4 + $0x24] sm:$0xf] %vm521, %v1151
    %1216 = vst.msk [vmem:[#allocation4 + $0x28] sm:$0xf] %vm521, %v1152
    %1217 = vst.msk [vmem:[#allocation4 + $0x2c] sm:$0xf] %vm521, %v1153
    %1218 = vst.msk [vmem:[#allocation4 + $0x30] sm:$0xf] %vm521, %v1154
    %1219 = vst.msk [vmem:[#allocation4 + $0x34] sm:$0xf] %vm521, %v1155
    %1220 = vst.msk [vmem:[#allocation4 + $0x38] sm:$0xf] %vm521, %v1156
    %1221 = vst.msk [vmem:[#allocation4 + $0x3c] sm:$0xf] %vm521, %v1157
    %1222 = vst.msk [vmem:[#allocation4 + $0x40] sm:$0xf] %vm521, %v1158
    %1223 = vst.msk [vmem:[#allocation4 + $0x44] sm:$0xf] %vm521, %v1159
    %1224 = vst.msk [vmem:[#allocation4 + $0x48] sm:$0xf] %vm521, %v1160
    %1225 = vst.msk [vmem:[#allocation4 + $0x4c] sm:$0xf] %vm521, %v1161
    %1226 = vst.msk [vmem:[#allocation4 + $0x50] sm:$0xf] %vm521, %v1162
    %1227 = vst.msk [vmem:[#allocation4 + $0x54] sm:$0xf] %vm521, %v1163
    %1228 = vst.msk [vmem:[#allocation4 + $0x58] sm:$0xf] %vm521, %v1164
    %1229 = vst.msk [vmem:[#allocation4 + $0x5c] sm:$0xf] %vm521, %v1165
    %1230 = vst.msk [vmem:[#allocation4 + $0x60] sm:$0xf] %vm521, %v1166
    %1231 = vst.msk [vmem:[#allocation4 + $0x64] sm:$0xf] %vm521, %v1167
    %1232 = vst.msk [vmem:[#allocation4 + $0x68] sm:$0xf] %vm521, %v1168
    %1233 = vst.msk [vmem:[#allocation4 + $0x6c] sm:$0xf] %vm521, %v1169
    %1234 = vst.msk [vmem:[#allocation4 + $0x70] sm:$0xf] %vm521, %v1170
    %1235 = vst.msk [vmem:[#allocation4 + $0x74] sm:$0xf] %vm521, %v1171
    %1236 = vst.msk [vmem:[#allocation4 + $0x78] sm:$0xf] %vm521, %v1172
    %1237 = vst.msk [vmem:[#allocation4 + $0x7c] sm:$0xf] %vm521, %v1173
    %v1238 = vld [vmem:[#allocation2] sm:$0xff]
    %v1239 = vld [vmem:[#allocation2 + $0x8] sm:$0xff]
    %v1240 = vld [vmem:[#allocation2 + $0x10] sm:$0xff]
    %v1241 = vld [vmem:[#allocation2 + $0x18] sm:$0xff]
    %v1242 = vld [vmem:[#allocation2 + $0x20] sm:$0xff]
    %v1243 = vld [vmem:[#allocation2 + $0x28] sm:$0xff]
    %v1244 = vld [vmem:[#allocation2 + $0x30] sm:$0xff]
    %v1245 = vld [vmem:[#allocation2 + $0x38] sm:$0xff]
    %v1246 = vld [vmem:[#allocation2 + $0x40] sm:$0xff]
    %v1247 = vld [vmem:[#allocation2 + $0x48] sm:$0xff]
    %v1248 = vld [vmem:[#allocation2 + $0x50] sm:$0xff]
    %v1249 = vld [vmem:[#allocation2 + $0x58] sm:$0xff]
    %v1250 = vld [vmem:[#allocation2 + $0x60] sm:$0xff]
    %v1251 = vld [vmem:[#allocation2 + $0x68] sm:$0xff]
    %v1252 = vld [vmem:[#allocation2 + $0x70] sm:$0xff]
    %v1253 = vld [vmem:[#allocation2 + $0x78] sm:$0xff]
    %v1254 = vld [vmem:[#allocation2 + $0x80] sm:$0xff]
    %v1255 = vld [vmem:[#allocation2 + $0x88] sm:$0xff]
    %v1256 = vld [vmem:[#allocation2 + $0x90] sm:$0xff]
    %v1257 = vld [vmem:[#allocation2 + $0x98] sm:$0xff]
    %v1258 = vld [vmem:[#allocation2 + $0xa0] sm:$0xff]
    %v1259 = vld [vmem:[#allocation2 + $0xa8] sm:$0xff]
    %v1260 = vld [vmem:[#allocation2 + $0xb0] sm:$0xff]
    %v1261 = vld [vmem:[#allocation2 + $0xb8] sm:$0xff]
    %v1262 = vld [vmem:[#allocation2 + $0xc0] sm:$0xff]
    %v1263 = vld [vmem:[#allocation2 + $0xc8] sm:$0xff]
    %v1264 = vld [vmem:[#allocation2 + $0xd0] sm:$0xff]
    %v1265 = vld [vmem:[#allocation2 + $0xd8] sm:$0xff]
    %v1266 = vld [vmem:[#allocation2 + $0xe0] sm:$0xff]
    %v1267 = vld [vmem:[#allocation2 + $0xe8] sm:$0xff]
    %v1268 = vld [vmem:[#allocation2 + $0xf0] sm:$0xff]
    %v1269 = vld [vmem:[#allocation2 + $0xf8] sm:$0xff]
    %v1270 = vld [vmem:[#allocation4] sm:$0xf]
    %v1271 = vld [vmem:[#allocation4 + $0x4] sm:$0xf]
    %v1272 = vld [vmem:[#allocation4 + $0x8] sm:$0xf]
    %v1273 = vld [vmem:[#allocation4 + $0xc] sm:$0xf]
    %v1274 = vld [vmem:[#allocation4 + $0x10] sm:$0xf]
    %v1275 = vld [vmem:[#allocation4 + $0x14] sm:$0xf]
    %v1276 = vld [vmem:[#allocation4 + $0x18] sm:$0xf]
    %v1277 = vld [vmem:[#allocation4 + $0x1c] sm:$0xf]
    %v1278 = vld [vmem:[#allocation4 + $0x20] sm:$0xf]
    %v1279 = vld [vmem:[#allocation4 + $0x24] sm:$0xf]
    %v1280 = vld [vmem:[#allocation4 + $0x28] sm:$0xf]
    %v1281 = vld [vmem:[#allocation4 + $0x2c] sm:$0xf]
    %v1282 = vld [vmem:[#allocation4 + $0x30] sm:$0xf]
    %v1283 = vld [vmem:[#allocation4 + $0x34] sm:$0xf]
    %v1284 = vld [vmem:[#allocation4 + $0x38] sm:$0xf]
    %v1285 = vld [vmem:[#allocation4 + $0x3c] sm:$0xf]
    %v1286 = vld [vmem:[#allocation4 + $0x40] sm:$0xf]
    %v1287 = vld [vmem:[#allocation4 + $0x44] sm:$0xf]
    %v1288 = vld [vmem:[#allocation4 + $0x48] sm:$0xf]
    %v1289 = vld [vmem:[#allocation4 + $0x4c] sm:$0xf]
    %v1290 = vld [vmem:[#allocation4 + $0x50] sm:$0xf]
    %v1291 = vld [vmem:[#allocation4 + $0x54] sm:$0xf]
    %v1292 = vld [vmem:[#allocation4 + $0x58] sm:$0xf]
    %v1293 = vld [vmem:[#allocation4 + $0x5c] sm:$0xf]
    %v1294 = vld [vmem:[#allocation4 + $0x60] sm:$0xf]
    %v1295 = vld [vmem:[#allocation4 + $0x64] sm:$0xf]
    %v1296 = vld [vmem:[#allocation4 + $0x68] sm:$0xf]
    %v1297 = vld [vmem:[#allocation4 + $0x6c] sm:$0xf]
    %v1298 = vld [vmem:[#allocation4 + $0x70] sm:$0xf]
    %v1299 = vld [vmem:[#allocation4 + $0x74] sm:$0xf]
    %v1300 = vld [vmem:[#allocation4 + $0x78] sm:$0xf]
    %v1301 = vld [vmem:[#allocation4 + $0x7c] sm:$0xf]
    %v1334 = vunpack.c.l.b16 %v1238
    %v1335 = vunpack.c.h.b16 %v1238
    %v1336 = vunpack.c.l.b16 %v1239
    %v1337 = vunpack.c.h.b16 %v1239
    %v1338 = vunpack.c.l.b16 %v1240
    %v1339 = vunpack.c.h.b16 %v1240
    %v1340 = vunpack.c.l.b16 %v1241
    %v1341 = vunpack.c.h.b16 %v1241
    %v1342 = vunpack.c.l.b16 %v1242
    %v1343 = vunpack.c.h.b16 %v1242
    %v1344 = vunpack.c.l.b16 %v1243
    %v1345 = vunpack.c.h.b16 %v1243
    %v1346 = vunpack.c.l.b16 %v1244
    %v1347 = vunpack.c.h.b16 %v1244
    %v1348 = vunpack.c.l.b16 %v1245
    %v1349 = vunpack.c.h.b16 %v1245
    %v1350 = vunpack.c.l.b16 %v1246
    %v1351 = vunpack.c.h.b16 %v1246
    %v1352 = vunpack.c.l.b16 %v1247
    %v1353 = vunpack.c.h.b16 %v1247
    %v1354 = vunpack.c.l.b16 %v1248
    %v1355 = vunpack.c.h.b16 %v1248
    %v1356 = vunpack.c.l.b16 %v1249
    %v1357 = vunpack.c.h.b16 %v1249
    %v1358 = vunpack.c.l.b16 %v1250
    %v1359 = vunpack.c.h.b16 %v1250
    %v1360 = vunpack.c.l.b16 %v1251
    %v1361 = vunpack.c.h.b16 %v1251
    %v1362 = vunpack.c.l.b16 %v1252
    %v1363 = vunpack.c.h.b16 %v1252
    %v1364 = vunpack.c.l.b16 %v1253
    %v1365 = vunpack.c.h.b16 %v1253
    %v1366 = vunpack.c.l.b16 %v1254
    %v1367 = vunpack.c.h.b16 %v1254
    %v1368 = vunpack.c.l.b16 %v1255
    %v1369 = vunpack.c.h.b16 %v1255
    %v1370 = vunpack.c.l.b16 %v1256
    %v1371 = vunpack.c.h.b16 %v1256
    %v1372 = vunpack.c.l.b16 %v1257
    %v1373 = vunpack.c.h.b16 %v1257
    %v1374 = vunpack.c.l.b16 %v1258
    %v1375 = vunpack.c.h.b16 %v1258
    %v1376 = vunpack.c.l.b16 %v1259
    %v1377 = vunpack.c.h.b16 %v1259
    %v1378 = vunpack.c.l.b16 %v1260
    %v1379 = vunpack.c.h.b16 %v1260
    %v1380 = vunpack.c.l.b16 %v1261
    %v1381 = vunpack.c.h.b16 %v1261
    %v1382 = vunpack.c.l.b16 %v1262
    %v1383 = vunpack.c.h.b16 %v1262
    %v1384 = vunpack.c.l.b16 %v1263
    %v1385 = vunpack.c.h.b16 %v1263
    %v1386 = vunpack.c.l.b16 %v1264
    %v1387 = vunpack.c.h.b16 %v1264
    %v1388 = vunpack.c.l.b16 %v1265
    %v1389 = vunpack.c.h.b16 %v1265
    %v1390 = vunpack.c.l.b16 %v1266
    %v1391 = vunpack.c.h.b16 %v1266
    %v1392 = vunpack.c.l.b16 %v1267
    %v1393 = vunpack.c.h.b16 %v1267
    %v1394 = vunpack.c.l.b16 %v1268
    %v1395 = vunpack.c.h.b16 %v1268
    %v1396 = vunpack.c.l.b16 %v1269
    %v1397 = vunpack.c.h.b16 %v1269
    %v1398 = vpack.c.b16 %v1336, %v1334
    %v1399 = vpack.c.b16 %v1337, %v1335
    %v1400 = vpack.c.b16 %v1340, %v1338
    %v1401 = vpack.c.b16 %v1341, %v1339
    %v1402 = vpack.c.b16 %v1344, %v1342
    %v1403 = vpack.c.b16 %v1345, %v1343
    %v1404 = vpack.c.b16 %v1348, %v1346
    %v1405 = vpack.c.b16 %v1349, %v1347
    %v1406 = vpack.c.b16 %v1352, %v1350
    %v1407 = vpack.c.b16 %v1353, %v1351
    %v1408 = vpack.c.b16 %v1356, %v1354
    %v1409 = vpack.c.b16 %v1357, %v1355
    %v1410 = vpack.c.b16 %v1360, %v1358
    %v1411 = vpack.c.b16 %v1361, %v1359
    %v1412 = vpack.c.b16 %v1364, %v1362
    %v1413 = vpack.c.b16 %v1365, %v1363
    %v1414 = vpack.c.b16 %v1368, %v1366
    %v1415 = vpack.c.b16 %v1369, %v1367
    %v1416 = vpack.c.b16 %v1372, %v1370
    %v1417 = vpack.c.b16 %v1373, %v1371
    %v1418 = vpack.c.b16 %v1376, %v1374
    %v1419 = vpack.c.b16 %v1377, %v1375
    %v1420 = vpack.c.b16 %v1380, %v1378
    %v1421 = vpack.c.b16 %v1381, %v1379
    %v1422 = vpack.c.b16 %v1384, %v1382
    %v1423 = vpack.c.b16 %v1385, %v1383
    %v1424 = vpack.c.b16 %v1388, %v1386
    %v1425 = vpack.c.b16 %v1389, %v1387
    %v1426 = vpack.c.b16 %v1392, %v1390
    %v1427 = vpack.c.b16 %v1393, %v1391
    %v1428 = vpack.c.b16 %v1396, %v1394
    %v1429 = vpack.c.b16 %v1397, %v1395
    %v1494 = vunpack.c.l.b16 %v1270
    %v1495 = vunpack.c.l.b16 %v1271
    %v1496 = vunpack.c.l.b16 %v1272
    %v1497 = vunpack.c.l.b16 %v1273
    %v1498 = vunpack.c.l.b16 %v1274
    %v1499 = vunpack.c.l.b16 %v1275
    %v1500 = vunpack.c.l.b16 %v1276
    %v1501 = vunpack.c.l.b16 %v1277
    %v1502 = vunpack.c.l.b16 %v1278
    %v1503 = vunpack.c.l.b16 %v1279
    %v1504 = vunpack.c.l.b16 %v1280
    %v1505 = vunpack.c.l.b16 %v1281
    %v1506 = vunpack.c.l.b16 %v1282
    %v1507 = vunpack.c.l.b16 %v1283
    %v1508 = vunpack.c.l.b16 %v1284
    %v1509 = vunpack.c.l.b16 %v1285
    %v1510 = vunpack.c.l.b16 %v1286
    %v1511 = vunpack.c.l.b16 %v1287
    %v1512 = vunpack.c.l.b16 %v1288
    %v1513 = vunpack.c.l.b16 %v1289
    %v1514 = vunpack.c.l.b16 %v1290
    %v1515 = vunpack.c.l.b16 %v1291
    %v1516 = vunpack.c.l.b16 %v1292
    %v1517 = vunpack.c.l.b16 %v1293
    %v1518 = vunpack.c.l.b16 %v1294
    %v1519 = vunpack.c.l.b16 %v1295
    %v1520 = vunpack.c.l.b16 %v1296
    %v1521 = vunpack.c.l.b16 %v1297
    %v1522 = vunpack.c.l.b16 %v1298
    %v1523 = vunpack.c.l.b16 %v1299
    %v1524 = vunpack.c.l.b16 %v1300
    %v1525 = vunpack.c.l.b16 %v1301
    %v1526 = vpack.c.b16 %v1495, %v1494
    %v1527 = vpack.c.b16 %v1497, %v1496
    %v1528 = vpack.c.b16 %v1499, %v1498
    %v1529 = vpack.c.b16 %v1501, %v1500
    %v1530 = vpack.c.b16 %v1503, %v1502
    %v1531 = vpack.c.b16 %v1505, %v1504
    %v1532 = vpack.c.b16 %v1507, %v1506
    %v1533 = vpack.c.b16 %v1509, %v1508
    %v1534 = vpack.c.b16 %v1511, %v1510
    %v1535 = vpack.c.b16 %v1513, %v1512
    %v1536 = vpack.c.b16 %v1515, %v1514
    %v1537 = vpack.c.b16 %v1517, %v1516
    %v1538 = vpack.c.b16 %v1519, %v1518
    %v1539 = vpack.c.b16 %v1521, %v1520
    %v1540 = vpack.c.b16 %v1523, %v1522
    %v1541 = vpack.c.b16 %v1525, %v1524
    %1558 = vmatprep.subr.bf16.mxu0 0
    %1559 = vmatpush1.bf16.msra.mxu0 %v1533
    %1560 = vmatprep.subr.bf16.mxu0 0
    %1561 = vmatpush1.bf16.msra.mxu0 %v1532
    %1562 = vmatprep.subr.bf16.mxu0 0
    %1563 = vmatpush1.bf16.msra.mxu0 %v1531
    %1564 = vmatprep.subr.bf16.mxu0 0
    %1565 = vmatpush1.bf16.msra.mxu0 %v1530
    %1566 = vmatprep.subr.bf16.mxu0 0
    %1567 = vmatpush1.bf16.msra.mxu0 %v1529
    %1568 = vmatprep.subr.bf16.mxu0 0
    %1569 = vmatpush1.bf16.msra.mxu0 %v1528
    %1570 = vmatprep.subr.bf16.mxu0 0
    %1571 = vmatpush1.bf16.msra.mxu0 %v1527
    %1572 = vmatprep.subr.bf16.mxu0 0
    %1573 = vmatpush1.bf16.msra.mxu0 %v1526
    %1574 = vmatprep.subr.bf16.mxu0 0
    %1575 = vmatpush2.bf16.msra.mxu0 %v1541
    %1576 = vmatprep.subr.bf16.mxu0 0
    %1577 = vmatpush2.bf16.msra.mxu0 %v1540
    %1578 = vmatprep.subr.bf16.mxu0 0
    %1579 = vmatpush2.bf16.msra.mxu0 %v1539
    %1580 = vmatprep.subr.bf16.mxu0 0
    %1581 = vmatpush2.bf16.msra.mxu0 %v1538
    %1582 = vmatprep.subr.bf16.mxu0 0
    %1583 = vmatpush2.bf16.msra.mxu0 %v1537
    %1584 = vmatprep.subr.bf16.mxu0 0
    %1585 = vmatpush2.bf16.msra.mxu0 %v1536
    %1586 = vmatprep.subr.bf16.mxu0 0
    %1587 = vmatpush2.bf16.msra.mxu0 %v1535
    %1588 = vmatprep.subr.bf16.mxu0 0
    %1589 = vmatpush2.bf16.msra.mxu0 %v1534
    %1590 = vmatprep.mubr.bf16.mxu0 %v1399
    %1591 = vmatmul.mubr.bf16.gmra.mxu0 %v1398
    %v1592 = vpop.f32.mrf.mxu0
    %v1593 = vadd.f32 0.0, %v1592
    %v1594 = vpop.f32.mrf.mxu0
    %v1595 = vpop.f32.mrf.mxu0
    %v1596 = vadd.f32 0.0, %v1595
    %v1597 = vpop.f32.mrf.mxu0
    %1598 = vmatprep.mubr.bf16.mxu0 %v1401
    %1599 = vmatmul.mubr.bf16.gmra.mxu0 %v1400
    %v1600 = vpop.f32.mrf.mxu0
    %v1601 = vadd.f32 0.0, %v1600
    %v1602 = vpop.f32.mrf.mxu0
    %v1603 = vpop.f32.mrf.mxu0
    %v1604 = vadd.f32 0.0, %v1603
    %v1605 = vpop.f32.mrf.mxu0
    %1606 = vmatprep.mubr.bf16.mxu0 %v1403
    %1607 = vmatmul.mubr.bf16.gmra.mxu0 %v1402
    %v1608 = vpop.f32.mrf.mxu0
    %v1609 = vadd.f32 0.0, %v1608
    %v1610 = vpop.f32.mrf.mxu0
    %v1611 = vpop.f32.mrf.mxu0
    %v1612 = vadd.f32 0.0, %v1611
    %v1613 = vpop.f32.mrf.mxu0
    %1614 = vmatprep.mubr.bf16.mxu0 %v1405
    %1615 = vmatmul.mubr.bf16.gmra.mxu0 %v1404
    %v1616 = vpop.f32.mrf.mxu0
    %v1617 = vadd.f32 0.0, %v1616
    %v1618 = vpop.f32.mrf.mxu0
    %v1619 = vpop.f32.mrf.mxu0
    %v1620 = vadd.f32 0.0, %v1619
    %v1621 = vpop.f32.mrf.mxu0
    %1622 = vmatprep.mubr.bf16.mxu0 %v1407
    %1623 = vmatmul.mubr.bf16.gmra.mxu0 %v1406
    %v1624 = vpop.f32.mrf.mxu0
    %v1625 = vadd.f32 0.0, %v1624
    %v1626 = vpop.f32.mrf.mxu0
    %v1627 = vpop.f32.mrf.mxu0
    %v1628 = vadd.f32 0.0, %v1627
    %v1629 = vpop.f32.mrf.mxu0
    %1630 = vmatprep.mubr.bf16.mxu0 %v1409
    %1631 = vmatmul.mubr.bf16.gmra.mxu0 %v1408
    %v1632 = vpop.f32.mrf.mxu0
    %v1633 = vadd.f32 0.0, %v1632
    %v1634 = vpop.f32.mrf.mxu0
    %v1635 = vpop.f32.mrf.mxu0
    %v1636 = vadd.f32 0.0, %v1635
    %v1637 = vpop.f32.mrf.mxu0
    %1638 = vmatprep.mubr.bf16.mxu0 %v1411
    %1639 = vmatmul.mubr.bf16.gmra.mxu0 %v1410
    %v1640 = vpop.f32.mrf.mxu0
    %v1641 = vadd.f32 0.0, %v1640
    %v1642 = vpop.f32.mrf.mxu0
    %v1643 = vpop.f32.mrf.mxu0
    %v1644 = vadd.f32 0.0, %v1643
    %v1645 = vpop.f32.mrf.mxu0
    %1646 = vmatprep.mubr.bf16.mxu0 %v1413
    %1647 = vmatmul.mubr.bf16.gmra.mxu0 %v1412
    %v1648 = vpop.f32.mrf.mxu0
    %v1649 = vadd.f32 0.0, %v1648
    %v1650 = vpop.f32.mrf.mxu0
    %v1651 = vpop.f32.mrf.mxu0
    %v1652 = vadd.f32 0.0, %v1651
    %v1653 = vpop.f32.mrf.mxu0
    %1654 = vmatprep.mubr.bf16.mxu0 %v1415
    %1655 = vmatmul.mubr.bf16.gmra.mxu0 %v1414
    %v1656 = vpop.f32.mrf.mxu0
    %v1657 = vadd.f32 0.0, %v1656
    %v1658 = vpop.f32.mrf.mxu0
    %v1659 = vpop.f32.mrf.mxu0
    %v1660 = vadd.f32 0.0, %v1659
    %v1661 = vpop.f32.mrf.mxu0
    %1662 = vmatprep.mubr.bf16.mxu0 %v1417
    %1663 = vmatmul.mubr.bf16.gmra.mxu0 %v1416
    %v1664 = vpop.f32.mrf.mxu0
    %v1665 = vadd.f32 0.0, %v1664
    %v1666 = vpop.f32.mrf.mxu0
    %v1667 = vpop.f32.mrf.mxu0
    %v1668 = vadd.f32 0.0, %v1667
    %v1669 = vpop.f32.mrf.mxu0
    %1670 = vmatprep.mubr.bf16.mxu0 %v1419
    %1671 = vmatmul.mubr.bf16.gmra.mxu0 %v1418
    %v1672 = vpop.f32.mrf.mxu0
    %v1673 = vadd.f32 0.0, %v1672
    %v1674 = vpop.f32.mrf.mxu0
    %v1675 = vpop.f32.mrf.mxu0
    %v1676 = vadd.f32 0.0, %v1675
    %v1677 = vpop.f32.mrf.mxu0
    %1678 = vmatprep.mubr.bf16.mxu0 %v1421
    %1679 = vmatmul.mubr.bf16.gmra.mxu0 %v1420
    %v1680 = vpop.f32.mrf.mxu0
    %v1681 = vadd.f32 0.0, %v1680
    %v1682 = vpop.f32.mrf.mxu0
    %v1683 = vpop.f32.mrf.mxu0
    %v1684 = vadd.f32 0.0, %v1683
    %v1685 = vpop.f32.mrf.mxu0
    %1686 = vmatprep.mubr.bf16.mxu0 %v1423
    %1687 = vmatmul.mubr.bf16.gmra.mxu0 %v1422
    %v1688 = vpop.f32.mrf.mxu0
    %v1689 = vadd.f32 0.0, %v1688
    %v1690 = vpop.f32.mrf.mxu0
    %v1691 = vpop.f32.mrf.mxu0
    %v1692 = vadd.f32 0.0, %v1691
    %v1693 = vpop.f32.mrf.mxu0
    %1694 = vmatprep.mubr.bf16.mxu0 %v1425
    %1695 = vmatmul.mubr.bf16.gmra.mxu0 %v1424
    %v1696 = vpop.f32.mrf.mxu0
    %v1697 = vadd.f32 0.0, %v1696
    %v1698 = vpop.f32.mrf.mxu0
    %v1699 = vpop.f32.mrf.mxu0
    %v1700 = vadd.f32 0.0, %v1699
    %v1701 = vpop.f32.mrf.mxu0
    %1702 = vmatprep.mubr.bf16.mxu0 %v1427
    %1703 = vmatmul.mubr.bf16.gmra.mxu0 %v1426
    %v1704 = vpop.f32.mrf.mxu0
    %v1705 = vadd.f32 0.0, %v1704
    %v1706 = vpop.f32.mrf.mxu0
    %v1707 = vpop.f32.mrf.mxu0
    %v1708 = vadd.f32 0.0, %v1707
    %v1709 = vpop.f32.mrf.mxu0
    %1710 = vmatprep.mubr.bf16.mxu0 %v1429
    %1711 = vmatmul.mubr.bf16.gmra.mxu0 %v1428
    %v1712 = vpop.f32.mrf.mxu0
    %v1713 = vadd.f32 0.0, %v1712
    %v1714 = vpop.f32.mrf.mxu0
    %v1715 = vpop.f32.mrf.mxu0
    %v1716 = vadd.f32 0.0, %v1715
    %v1717 = vpop.f32.mrf.mxu0
    %1718 = vdwg.mxu0
    %v1719 = vpack.c.bf16 %v1596, %v1593
    %v1720 = vpack.c.bf16 %v1604, %v1601
    %v1721 = vpack.c.bf16 %v1612, %v1609
    %v1722 = vpack.c.bf16 %v1620, %v1617
    %v1723 = vpack.c.bf16 %v1628, %v1625
    %v1724 = vpack.c.bf16 %v1636, %v1633
    %v1725 = vpack.c.bf16 %v1644, %v1641
    %v1726 = vpack.c.bf16 %v1652, %v1649
    %v1727 = vpack.c.bf16 %v1660, %v1657
    %v1728 = vpack.c.bf16 %v1668, %v1665
    %v1729 = vpack.c.bf16 %v1676, %v1673
    %v1730 = vpack.c.bf16 %v1684, %v1681
    %v1731 = vpack.c.bf16 %v1692, %v1689
    %v1732 = vpack.c.bf16 %v1700, %v1697
    %v1733 = vpack.c.bf16 %v1708, %v1705
    %v1734 = vpack.c.bf16 %v1716, %v1713
    %v1735 = vld [vmem:[#allocation7] sm:$0xf]
    %v1736 = vld [vmem:[#allocation7 + $0x4] sm:$0xf]
    %v1737 = vld [vmem:[#allocation7 + $0x8] sm:$0xf]
    %v1738 = vld [vmem:[#allocation7 + $0xc] sm:$0xf]
    %v1739 = vld [vmem:[%s5] sm:$0x1]
    %v1741 = vlaneseq
    %v1742 = vshrl.u32 %v1741, 7
    %v1743 = vsub.s32 0, %v1742
    %v1744 = vrot.slane %v1739, %v1743
    %v1750 = vunpack.c.l.b16 %v1735
    %v1751 = vunpack.c.l.b16 %v1736
    %v1752 = vunpack.c.l.b16 %v1737
    %v1753 = vunpack.c.l.b16 %v1738
    %v1754 = vpack.c.b16 %v1751, %v1750
    %v1755 = vpack.c.b16 %v1753, %v1752
    %vm1758 = vcmask 261120
    %v1760 = vsel %vm1758, %v1719, 0
    %v1763 = vsel %vm1758, %v1720, 0
    %v1766 = vsel %vm1758, %v1721, 0
    %v1769 = vsel %vm1758, %v1722, 0
    %v1772 = vsel %vm1758, %v1723, 0
    %v1775 = vsel %vm1758, %v1724, 0
    %v1778 = vsel %vm1758, %v1725, 0
    %v1781 = vsel %vm1758, %v1726, 0
    %v1784 = vsel %vm1758, %v1727, 0
    %v1787 = vsel %vm1758, %v1728, 0
    %v1790 = vsel %vm1758, %v1729, 0
    %v1793 = vsel %vm1758, %v1730, 0
    %v1796 = vsel %vm1758, %v1731, 0
    %v1799 = vsel %vm1758, %v1732, 0
    %v1802 = vsel %vm1758, %v1733, 0
    %v1805 = vsel %vm1758, %v1734, 0
    %1807 = vmatprep.subr.bf16.mxu0 0
    %1808 = vmatpush1.bf16.msra.mxu0 0
    %1809 = vmatprep.subr.bf16.mxu0 0
    %1810 = vmatpush1.bf16.msra.mxu0 0
    %1811 = vmatprep.subr.bf16.mxu0 0
    %1812 = vmatpush1.bf16.msra.mxu0 0
    %1813 = vmatprep.subr.bf16.mxu0 0
    %1814 = vmatpush1.bf16.msra.mxu0 0
    %1815 = vmatprep.subr.bf16.mxu0 0
    %1816 = vmatpush1.bf16.msra.mxu0 0
    %1817 = vmatprep.subr.bf16.mxu0 0
    %1818 = vmatpush1.bf16.msra.mxu0 0
    %1819 = vmatprep.subr.bf16.mxu0 0
    %1820 = vmatpush1.bf16.msra.mxu0 %v1755
    %1821 = vmatprep.subr.bf16.mxu0 0
    %1822 = vmatpush1.bf16.msra.mxu0 %v1754
    %1823 = vmatprep.subr.bf16.mxu0 0
    %1824 = vmatpush2.bf16.msra.mxu0 0
    %1825 = vmatprep.subr.bf16.mxu0 0
    %1826 = vmatpush2.bf16.msra.mxu0 0
    %1827 = vmatprep.subr.bf16.mxu0 0
    %1828 = vmatpush2.bf16.msra.mxu0 0
    %1829 = vmatprep.subr.bf16.mxu0 0
    %1830 = vmatpush2.bf16.msra.mxu0 0
    %1831 = vmatprep.subr.bf16.mxu0 0
    %1832 = vmatpush2.bf16.msra.mxu0 0
    %1833 = vmatprep.subr.bf16.mxu0 0
    %1834 = vmatpush2.bf16.msra.mxu0 0
    %1835 = vmatprep.subr.bf16.mxu0 0
    %1836 = vmatpush2.bf16.msra.mxu0 0
    %1837 = vmatprep.subr.bf16.mxu0 0
    %1838 = vmatpush2.bf16.msra.mxu0 0
    %1839 = vmatprep.mubr.bf16.mxu0 0
    %1840 = vmatmul.mubr.bf16.gmra.mxu0 %v1760
    %v1841 = vpop.f32.mrf.mxu0
    %v1842 = vadd.f32 %v1744, %v1841
    %v1843 = vpop.f32.mrf.mxu0
    %v1844 = vpop.f32.mrf.mxu0
    %v1845 = vadd.f32 %v1744, %v1844
    %v1846 = vpop.f32.mrf.mxu0
    %1847 = vmatprep.mubr.bf16.mxu0 0
    %1848 = vmatmul.mubr.bf16.gmra.mxu0 %v1763
    %v1849 = vpop.f32.mrf.mxu0
    %v1850 = vadd.f32 %v1744, %v1849
    %v1851 = vpop.f32.mrf.mxu0
    %v1852 = vpop.f32.mrf.mxu0
    %v1853 = vadd.f32 %v1744, %v1852
    %v1854 = vpop.f32.mrf.mxu0
    %1855 = vmatprep.mubr.bf16.mxu0 0
    %1856 = vmatmul.mubr.bf16.gmra.mxu0 %v1766
    %v1857 = vpop.f32.mrf.mxu0
    %v1858 = vadd.f32 %v1744, %v1857
    %v1859 = vpop.f32.mrf.mxu0
    %v1860 = vpop.f32.mrf.mxu0
    %v1861 = vadd.f32 %v1744, %v1860
    %v1862 = vpop.f32.mrf.mxu0
    %1863 = vmatprep.mubr.bf16.mxu0 0
    %1864 = vmatmul.mubr.bf16.gmra.mxu0 %v1769
    %v1865 = vpop.f32.mrf.mxu0
    %v1866 = vadd.f32 %v1744, %v1865
    %v1867 = vpop.f32.mrf.mxu0
    %v1868 = vpop.f32.mrf.mxu0
    %v1869 = vadd.f32 %v1744, %v1868
    %v1870 = vpop.f32.mrf.mxu0
    %1871 = vmatprep.mubr.bf16.mxu0 0
    %1872 = vmatmul.mubr.bf16.gmra.mxu0 %v1772
    %v1873 = vpop.f32.mrf.mxu0
    %v1874 = vadd.f32 %v1744, %v1873
    %v1875 = vpop.f32.mrf.mxu0
    %v1876 = vpop.f32.mrf.mxu0
    %v1877 = vadd.f32 %v1744, %v1876
    %v1878 = vpop.f32.mrf.mxu0
    %1879 = vmatprep.mubr.bf16.mxu0 0
    %1880 = vmatmul.mubr.bf16.gmra.mxu0 %v1775
    %v1881 = vpop.f32.mrf.mxu0
    %v1882 = vadd.f32 %v1744, %v1881
    %v1883 = vpop.f32.mrf.mxu0
    %v1884 = vpop.f32.mrf.mxu0
    %v1885 = vadd.f32 %v1744, %v1884
    %v1886 = vpop.f32.mrf.mxu0
    %1887 = vmatprep.mubr.bf16.mxu0 0
    %1888 = vmatmul.mubr.bf16.gmra.mxu0 %v1778
    %v1889 = vpop.f32.mrf.mxu0
    %v1890 = vadd.f32 %v1744, %v1889
    %v1891 = vpop.f32.mrf.mxu0
    %v1892 = vpop.f32.mrf.mxu0
    %v1893 = vadd.f32 %v1744, %v1892
    %v1894 = vpop.f32.mrf.mxu0
    %1895 = vmatprep.mubr.bf16.mxu0 0
    %1896 = vmatmul.mubr.bf16.gmra.mxu0 %v1781
    %v1897 = vpop.f32.mrf.mxu0
    %v1898 = vadd.f32 %v1744, %v1897
    %v1899 = vpop.f32.mrf.mxu0
    %v1900 = vpop.f32.mrf.mxu0
    %v1901 = vadd.f32 %v1744, %v1900
    %v1902 = vpop.f32.mrf.mxu0
    %1903 = vmatprep.mubr.bf16.mxu0 0
    %1904 = vmatmul.mubr.bf16.gmra.mxu0 %v1784
    %v1905 = vpop.f32.mrf.mxu0
    %v1906 = vadd.f32 %v1744, %v1905
    %v1907 = vpop.f32.mrf.mxu0
    %v1908 = vpop.f32.mrf.mxu0
    %v1909 = vadd.f32 %v1744, %v1908
    %v1910 = vpop.f32.mrf.mxu0
    %1911 = vmatprep.mubr.bf16.mxu0 0
    %1912 = vmatmul.mubr.bf16.gmra.mxu0 %v1787
    %v1913 = vpop.f32.mrf.mxu0
    %v1914 = vadd.f32 %v1744, %v1913
    %v1915 = vpop.f32.mrf.mxu0
    %v1916 = vpop.f32.mrf.mxu0
    %v1917 = vadd.f32 %v1744, %v1916
    %v1918 = vpop.f32.mrf.mxu0
    %1919 = vmatprep.mubr.bf16.mxu0 0
    %1920 = vmatmul.mubr.bf16.gmra.mxu0 %v1790
    %v1921 = vpop.f32.mrf.mxu0
    %v1922 = vadd.f32 %v1744, %v1921
    %v1923 = vpop.f32.mrf.mxu0
    %v1924 = vpop.f32.mrf.mxu0
    %v1925 = vadd.f32 %v1744, %v1924
    %v1926 = vpop.f32.mrf.mxu0
    %1927 = vmatprep.mubr.bf16.mxu0 0
    %1928 = vmatmul.mubr.bf16.gmra.mxu0 %v1793
    %v1929 = vpop.f32.mrf.mxu0
    %v1930 = vadd.f32 %v1744, %v1929
    %v1931 = vpop.f32.mrf.mxu0
    %v1932 = vpop.f32.mrf.mxu0
    %v1933 = vadd.f32 %v1744, %v1932
    %v1934 = vpop.f32.mrf.mxu0
    %1935 = vmatprep.mubr.bf16.mxu0 0
    %1936 = vmatmul.mubr.bf16.gmra.mxu0 %v1796
    %v1937 = vpop.f32.mrf.mxu0
    %v1938 = vadd.f32 %v1744, %v1937
    %v1939 = vpop.f32.mrf.mxu0
    %v1940 = vpop.f32.mrf.mxu0
    %v1941 = vadd.f32 %v1744, %v1940
    %v1942 = vpop.f32.mrf.mxu0
    %1943 = vmatprep.mubr.bf16.mxu0 0
    %1944 = vmatmul.mubr.bf16.gmra.mxu0 %v1799
    %v1945 = vpop.f32.mrf.mxu0
    %v1946 = vadd.f32 %v1744, %v1945
    %v1947 = vpop.f32.mrf.mxu0
    %v1948 = vpop.f32.mrf.mxu0
    %v1949 = vadd.f32 %v1744, %v1948
    %v1950 = vpop.f32.mrf.mxu0
    %1951 = vmatprep.mubr.bf16.mxu0 0
    %1952 = vmatmul.mubr.bf16.gmra.mxu0 %v1802
    %v1953 = vpop.f32.mrf.mxu0
    %v1954 = vadd.f32 %v1744, %v1953
    %v1955 = vpop.f32.mrf.mxu0
    %v1956 = vpop.f32.mrf.mxu0
    %v1957 = vadd.f32 %v1744, %v1956
    %v1958 = vpop.f32.mrf.mxu0
    %1959 = vmatprep.mubr.bf16.mxu0 0
    %1960 = vmatmul.mubr.bf16.gmra.mxu0 %v1805
    %v1961 = vpop.f32.mrf.mxu0
    %v1962 = vadd.f32 %v1744, %v1961
    %v1963 = vpop.f32.mrf.mxu0
    %v1964 = vpop.f32.mrf.mxu0
    %v1965 = vadd.f32 %v1744, %v1964
    %v1966 = vpop.f32.mrf.mxu0
    %1967 = vdwg.mxu0
    %v1968 = vmax.f32 %v1842, 0.0
    %v1969 = vmax.f32 %v1845, 0.0
    %v1970 = vmax.f32 %v1850, 0.0
    %v1971 = vmax.f32 %v1853, 0.0
    %v1972 = vmax.f32 %v1858, 0.0
    %v1973 = vmax.f32 %v1861, 0.0
    %v1974 = vmax.f32 %v1866, 0.0
    %v1975 = vmax.f32 %v1869, 0.0
    %v1976 = vmax.f32 %v1874, 0.0
    %v1977 = vmax.f32 %v1877, 0.0
    %v1978 = vmax.f32 %v1882, 0.0
    %v1979 = vmax.f32 %v1885, 0.0
    %v1980 = vmax.f32 %v1890, 0.0
    %v1981 = vmax.f32 %v1893, 0.0
    %v1982 = vmax.f32 %v1898, 0.0
    %v1983 = vmax.f32 %v1901, 0.0
    %v1984 = vmax.f32 %v1906, 0.0
    %v1985 = vmax.f32 %v1909, 0.0
    %v1986 = vmax.f32 %v1914, 0.0
    %v1987 = vmax.f32 %v1917, 0.0
    %v1988 = vmax.f32 %v1922, 0.0
    %v1989 = vmax.f32 %v1925, 0.0
    %v1990 = vmax.f32 %v1930, 0.0
    %v1991 = vmax.f32 %v1933, 0.0
    %v1992 = vmax.f32 %v1938, 0.0
    %v1993 = vmax.f32 %v1941, 0.0
    %v1994 = vmax.f32 %v1946, 0.0
    %v1995 = vmax.f32 %v1949, 0.0
    %v1996 = vmax.f32 %v1954, 0.0
    %v1997 = vmax.f32 %v1957, 0.0
    %v1998 = vmax.f32 %v1962, 0.0
    %v1999 = vmax.f32 %v1965, 0.0
    %v2000 = vpack.c.bf16 %v1969, %v1968
    %v2001 = vpack.c.bf16 %v1971, %v1970
    %v2002 = vpack.c.bf16 %v1973, %v1972
    %v2003 = vpack.c.bf16 %v1975, %v1974
    %v2004 = vpack.c.bf16 %v1977, %v1976
    %v2005 = vpack.c.bf16 %v1979, %v1978
    %v2006 = vpack.c.bf16 %v1981, %v1980
    %v2007 = vpack.c.bf16 %v1983, %v1982
    %v2008 = vpack.c.bf16 %v1985, %v1984
    %v2009 = vpack.c.bf16 %v1987, %v1986
    %v2010 = vpack.c.bf16 %v1989, %v1988
    %v2011 = vpack.c.bf16 %v1991, %v1990
    %v2012 = vpack.c.bf16 %v1993, %v1992
    %v2013 = vpack.c.bf16 %v1995, %v1994
    %v2014 = vpack.c.bf16 %v1997, %v1996
    %v2015 = vpack.c.bf16 %v1999, %v1998
    %v2032 = vunpack.c.l.b16 %v2000
    %v2033 = vunpack.c.h.b16 %v2000
    %v2034 = vunpack.c.l.b16 %v2001
    %v2035 = vunpack.c.h.b16 %v2001
    %v2036 = vunpack.c.l.b16 %v2002
    %v2037 = vunpack.c.h.b16 %v2002
    %v2038 = vunpack.c.l.b16 %v2003
    %v2039 = vunpack.c.h.b16 %v2003
    %v2040 = vunpack.c.l.b16 %v2004
    %v2041 = vunpack.c.h.b16 %v2004
    %v2042 = vunpack.c.l.b16 %v2005
    %v2043 = vunpack.c.h.b16 %v2005
    %v2044 = vunpack.c.l.b16 %v2006
    %v2045 = vunpack.c.h.b16 %v2006
    %v2046 = vunpack.c.l.b16 %v2007
    %v2047 = vunpack.c.h.b16 %v2007
    %v2048 = vunpack.c.l.b16 %v2008
    %v2049 = vunpack.c.h.b16 %v2008
    %v2050 = vunpack.c.l.b16 %v2009
    %v2051 = vunpack.c.h.b16 %v2009
    %v2052 = vunpack.c.l.b16 %v2010
    %v2053 = vunpack.c.h.b16 %v2010
    %v2054 = vunpack.c.l.b16 %v2011
    %v2055 = vunpack.c.h.b16 %v2011
    %v2056 = vunpack.c.l.b16 %v2012
    %v2057 = vunpack.c.h.b16 %v2012
    %v2058 = vunpack.c.l.b16 %v2013
    %v2059 = vunpack.c.h.b16 %v2013
    %v2060 = vunpack.c.l.b16 %v2014
    %v2061 = vunpack.c.h.b16 %v2014
    %v2062 = vunpack.c.l.b16 %v2015
    %v2063 = vunpack.c.h.b16 %v2015
    %v2064 = vpack.c.b16 %v2032, %v2032
    %v2065 = vpack.c.b16 %v2033, %v2033
    %v2066 = vpack.c.b16 %v2034, %v2034
    %v2067 = vpack.c.b16 %v2035, %v2035
    %v2068 = vpack.c.b16 %v2036, %v2036
    %v2069 = vpack.c.b16 %v2037, %v2037
    %v2070 = vpack.c.b16 %v2038, %v2038
    %v2071 = vpack.c.b16 %v2039, %v2039
    %v2072 = vpack.c.b16 %v2040, %v2040
    %v2073 = vpack.c.b16 %v2041, %v2041
    %v2074 = vpack.c.b16 %v2042, %v2042
    %v2075 = vpack.c.b16 %v2043, %v2043
    %v2076 = vpack.c.b16 %v2044, %v2044
    %v2077 = vpack.c.b16 %v2045, %v2045
    %v2078 = vpack.c.b16 %v2046, %v2046
    %v2079 = vpack.c.b16 %v2047, %v2047
    %v2080 = vpack.c.b16 %v2048, %v2048
    %v2081 = vpack.c.b16 %v2049, %v2049
    %v2082 = vpack.c.b16 %v2050, %v2050
    %v2083 = vpack.c.b16 %v2051, %v2051
    %v2084 = vpack.c.b16 %v2052, %v2052
    %v2085 = vpack.c.b16 %v2053, %v2053
    %v2086 = vpack.c.b16 %v2054, %v2054
    %v2087 = vpack.c.b16 %v2055, %v2055
    %v2088 = vpack.c.b16 %v2056, %v2056
    %v2089 = vpack.c.b16 %v2057, %v2057
    %v2090 = vpack.c.b16 %v2058, %v2058
    %v2091 = vpack.c.b16 %v2059, %v2059
    %v2092 = vpack.c.b16 %v2060, %v2060
    %v2093 = vpack.c.b16 %v2061, %v2061
    %v2094 = vpack.c.b16 %v2062, %v2062
    %v2095 = vpack.c.b16 %v2063, %v2063
    %vm2128 = vcmask 519168
    %2129 = vst.msk [vmem:[#allocation5] sm:$0xf] %vm2128, %v2064
    %2130 = vst.msk [vmem:[#allocation5 + $0x4] sm:$0xf] %vm2128, %v2065
    %2131 = vst.msk [vmem:[#allocation5 + $0x8] sm:$0xf] %vm2128, %v2066
    %2132 = vst.msk [vmem:[#allocation5 + $0xc] sm:$0xf] %vm2128, %v2067
    %2133 = vst.msk [vmem:[#allocation5 + $0x10] sm:$0xf] %vm2128, %v2068
    %2134 = vst.msk [vmem:[#allocation5 + $0x14] sm:$0xf] %vm2128, %v2069
    %2135 = vst.msk [vmem:[#allocation5 + $0x18] sm:$0xf] %vm2128, %v2070
    %2136 = vst.msk [vmem:[#allocation5 + $0x1c] sm:$0xf] %vm2128, %v2071
    %2137 = vst.msk [vmem:[#allocation5 + $0x20] sm:$0xf] %vm2128, %v2072
    %2138 = vst.msk [vmem:[#allocation5 + $0x24] sm:$0xf] %vm2128, %v2073
    %2139 = vst.msk [vmem:[#allocation5 + $0x28] sm:$0xf] %vm2128, %v2074
    %2140 = vst.msk [vmem:[#allocation5 + $0x2c] sm:$0xf] %vm2128, %v2075
    %2141 = vst.msk [vmem:[#allocation5 + $0x30] sm:$0xf] %vm2128, %v2076
    %2142 = vst.msk [vmem:[#allocation5 + $0x34] sm:$0xf] %vm2128, %v2077
    %2143 = vst.msk [vmem:[#allocation5 + $0x38] sm:$0xf] %vm2128, %v2078
    %2144 = vst.msk [vmem:[#allocation5 + $0x3c] sm:$0xf] %vm2128, %v2079
    %2145 = vst.msk [vmem:[#allocation5 + $0x40] sm:$0xf] %vm2128, %v2080
    %2146 = vst.msk [vmem:[#allocation5 + $0x44] sm:$0xf] %vm2128, %v2081
    %2147 = vst.msk [vmem:[#allocation5 + $0x48] sm:$0xf] %vm2128, %v2082
    %2148 = vst.msk [vmem:[#allocation5 + $0x4c] sm:$0xf] %vm2128, %v2083
    %2149 = vst.msk [vmem:[#allocation5 + $0x50] sm:$0xf] %vm2128, %v2084
    %2150 = vst.msk [vmem:[#allocation5 + $0x54] sm:$0xf] %vm2128, %v2085
    %2151 = vst.msk [vmem:[#allocation5 + $0x58] sm:$0xf] %vm2128, %v2086
    %2152 = vst.msk [vmem:[#allocation5 + $0x5c] sm:$0xf] %vm2128, %v2087
    %2153 = vst.msk [vmem:[#allocation5 + $0x60] sm:$0xf] %vm2128, %v2088
    %2154 = vst.msk [vmem:[#allocation5 + $0x64] sm:$0xf] %vm2128, %v2089
    %2155 = vst.msk [vmem:[#allocation5 + $0x68] sm:$0xf] %vm2128, %v2090
    %2156 = vst.msk [vmem:[#allocation5 + $0x6c] sm:$0xf] %vm2128, %v2091
    %2157 = vst.msk [vmem:[#allocation5 + $0x70] sm:$0xf] %vm2128, %v2092
    %2158 = vst.msk [vmem:[#allocation5 + $0x74] sm:$0xf] %vm2128, %v2093
    %2159 = vst.msk [vmem:[#allocation5 + $0x78] sm:$0xf] %vm2128, %v2094
    %2160 = vst.msk [vmem:[#allocation5 + $0x7c] sm:$0xf] %vm2128, %v2095
    %v2161 = vld [vmem:[#allocation2] sm:$0xff]
    %v2162 = vld [vmem:[#allocation2 + $0x8] sm:$0xff]
    %v2163 = vld [vmem:[#allocation2 + $0x10] sm:$0xff]
    %v2164 = vld [vmem:[#allocation2 + $0x18] sm:$0xff]
    %v2165 = vld [vmem:[#allocation2 + $0x20] sm:$0xff]
    %v2166 = vld [vmem:[#allocation2 + $0x28] sm:$0xff]
    %v2167 = vld [vmem:[#allocation2 + $0x30] sm:$0xff]
    %v2168 = vld [vmem:[#allocation2 + $0x38] sm:$0xff]
    %v2169 = vld [vmem:[#allocation2 + $0x40] sm:$0xff]
    %v2170 = vld [vmem:[#allocation2 + $0x48] sm:$0xff]
    %v2171 = vld [vmem:[#allocation2 + $0x50] sm:$0xff]
    %v2172 = vld [vmem:[#allocation2 + $0x58] sm:$0xff]
    %v2173 = vld [vmem:[#allocation2 + $0x60] sm:$0xff]
    %v2174 = vld [vmem:[#allocation2 + $0x68] sm:$0xff]
    %v2175 = vld [vmem:[#allocation2 + $0x70] sm:$0xff]
    %v2176 = vld [vmem:[#allocation2 + $0x78] sm:$0xff]
    %v2177 = vld [vmem:[#allocation2 + $0x80] sm:$0xff]
    %v2178 = vld [vmem:[#allocation2 + $0x88] sm:$0xff]
    %v2179 = vld [vmem:[#allocation2 + $0x90] sm:$0xff]
    %v2180 = vld [vmem:[#allocation2 + $0x98] sm:$0xff]
    %v2181 = vld [vmem:[#allocation2 + $0xa0] sm:$0xff]
    %v2182 = vld [vmem:[#allocation2 + $0xa8] sm:$0xff]
    %v2183 = vld [vmem:[#allocation2 + $0xb0] sm:$0xff]
    %v2184 = vld [vmem:[#allocation2 + $0xb8] sm:$0xff]
    %v2185 = vld [vmem:[#allocation2 + $0xc0] sm:$0xff]
    %v2186 = vld [vmem:[#allocation2 + $0xc8] sm:$0xff]
    %v2187 = vld [vmem:[#allocation2 + $0xd0] sm:$0xff]
    %v2188 = vld [vmem:[#allocation2 + $0xd8] sm:$0xff]
    %v2189 = vld [vmem:[#allocation2 + $0xe0] sm:$0xff]
    %v2190 = vld [vmem:[#allocation2 + $0xe8] sm:$0xff]
    %v2191 = vld [vmem:[#allocation2 + $0xf0] sm:$0xff]
    %v2192 = vld [vmem:[#allocation2 + $0xf8] sm:$0xff]
    %v2193 = vld [vmem:[#allocation5] sm:$0xf]
    %v2194 = vld [vmem:[#allocation5 + $0x4] sm:$0xf]
    %v2195 = vld [vmem:[#allocation5 + $0x8] sm:$0xf]
    %v2196 = vld [vmem:[#allocation5 + $0xc] sm:$0xf]
    %v2197 = vld [vmem:[#allocation5 + $0x10] sm:$0xf]
    %v2198 = vld [vmem:[#allocation5 + $0x14] sm:$0xf]
    %v2199 = vld [vmem:[#allocation5 + $0x18] sm:$0xf]
    %v2200 = vld [vmem:[#allocation5 + $0x1c] sm:$0xf]
    %v2201 = vld [vmem:[#allocation5 + $0x20] sm:$0xf]
    %v2202 = vld [vmem:[#allocation5 + $0x24] sm:$0xf]
    %v2203 = vld [vmem:[#allocation5 + $0x28] sm:$0xf]
    %v2204 = vld [vmem:[#allocation5 + $0x2c] sm:$0xf]
    %v2205 = vld [vmem:[#allocation5 + $0x30] sm:$0xf]
    %v2206 = vld [vmem:[#allocation5 + $0x34] sm:$0xf]
    %v2207 = vld [vmem:[#allocation5 + $0x38] sm:$0xf]
    %v2208 = vld [vmem:[#allocation5 + $0x3c] sm:$0xf]
    %v2209 = vld [vmem:[#allocation5 + $0x40] sm:$0xf]
    %v2210 = vld [vmem:[#allocation5 + $0x44] sm:$0xf]
    %v2211 = vld [vmem:[#allocation5 + $0x48] sm:$0xf]
    %v2212 = vld [vmem:[#allocation5 + $0x4c] sm:$0xf]
    %v2213 = vld [vmem:[#allocation5 + $0x50] sm:$0xf]
    %v2214 = vld [vmem:[#allocation5 + $0x54] sm:$0xf]
    %v2215 = vld [vmem:[#allocation5 + $0x58] sm:$0xf]
    %v2216 = vld [vmem:[#allocation5 + $0x5c] sm:$0xf]
    %v2217 = vld [vmem:[#allocation5 + $0x60] sm:$0xf]
    %v2218 = vld [vmem:[#allocation5 + $0x64] sm:$0xf]
    %v2219 = vld [vmem:[#allocation5 + $0x68] sm:$0xf]
    %v2220 = vld [vmem:[#allocation5 + $0x6c] sm:$0xf]
    %v2221 = vld [vmem:[#allocation5 + $0x70] sm:$0xf]
    %v2222 = vld [vmem:[#allocation5 + $0x74] sm:$0xf]
    %v2223 = vld [vmem:[#allocation5 + $0x78] sm:$0xf]
    %v2224 = vld [vmem:[#allocation5 + $0x7c] sm:$0xf]
    %v2257 = vunpack.c.l.b16 %v2161
    %v2258 = vunpack.c.h.b16 %v2161
    %v2259 = vunpack.c.l.b16 %v2162
    %v2260 = vunpack.c.h.b16 %v2162
    %v2261 = vunpack.c.l.b16 %v2163
    %v2262 = vunpack.c.h.b16 %v2163
    %v2263 = vunpack.c.l.b16 %v2164
    %v2264 = vunpack.c.h.b16 %v2164
    %v2265 = vunpack.c.l.b16 %v2165
    %v2266 = vunpack.c.h.b16 %v2165
    %v2267 = vunpack.c.l.b16 %v2166
    %v2268 = vunpack.c.h.b16 %v2166
    %v2269 = vunpack.c.l.b16 %v2167
    %v2270 = vunpack.c.h.b16 %v2167
    %v2271 = vunpack.c.l.b16 %v2168
    %v2272 = vunpack.c.h.b16 %v2168
    %v2273 = vunpack.c.l.b16 %v2169
    %v2274 = vunpack.c.h.b16 %v2169
    %v2275 = vunpack.c.l.b16 %v2170
    %v2276 = vunpack.c.h.b16 %v2170
    %v2277 = vunpack.c.l.b16 %v2171
    %v2278 = vunpack.c.h.b16 %v2171
    %v2279 = vunpack.c.l.b16 %v2172
    %v2280 = vunpack.c.h.b16 %v2172
    %v2281 = vunpack.c.l.b16 %v2173
    %v2282 = vunpack.c.h.b16 %v2173
    %v2283 = vunpack.c.l.b16 %v2174
    %v2284 = vunpack.c.h.b16 %v2174
    %v2285 = vunpack.c.l.b16 %v2175
    %v2286 = vunpack.c.h.b16 %v2175
    %v2287 = vunpack.c.l.b16 %v2176
    %v2288 = vunpack.c.h.b16 %v2176
    %v2289 = vunpack.c.l.b16 %v2177
    %v2290 = vunpack.c.h.b16 %v2177
    %v2291 = vunpack.c.l.b16 %v2178
    %v2292 = vunpack.c.h.b16 %v2178
    %v2293 = vunpack.c.l.b16 %v2179
    %v2294 = vunpack.c.h.b16 %v2179
    %v2295 = vunpack.c.l.b16 %v2180
    %v2296 = vunpack.c.h.b16 %v2180
    %v2297 = vunpack.c.l.b16 %v2181
    %v2298 = vunpack.c.h.b16 %v2181
    %v2299 = vunpack.c.l.b16 %v2182
    %v2300 = vunpack.c.h.b16 %v2182
    %v2301 = vunpack.c.l.b16 %v2183
    %v2302 = vunpack.c.h.b16 %v2183
    %v2303 = vunpack.c.l.b16 %v2184
    %v2304 = vunpack.c.h.b16 %v2184
    %v2305 = vunpack.c.l.b16 %v2185
    %v2306 = vunpack.c.h.b16 %v2185
    %v2307 = vunpack.c.l.b16 %v2186
    %v2308 = vunpack.c.h.b16 %v2186
    %v2309 = vunpack.c.l.b16 %v2187
    %v2310 = vunpack.c.h.b16 %v2187
    %v2311 = vunpack.c.l.b16 %v2188
    %v2312 = vunpack.c.h.b16 %v2188
    %v2313 = vunpack.c.l.b16 %v2189
    %v2314 = vunpack.c.h.b16 %v2189
    %v2315 = vunpack.c.l.b16 %v2190
    %v2316 = vunpack.c.h.b16 %v2190
    %v2317 = vunpack.c.l.b16 %v2191
    %v2318 = vunpack.c.h.b16 %v2191
    %v2319 = vunpack.c.l.b16 %v2192
    %v2320 = vunpack.c.h.b16 %v2192
    %v2321 = vpack.c.b16 %v2259, %v2257
    %v2322 = vpack.c.b16 %v2260, %v2258
    %v2323 = vpack.c.b16 %v2263, %v2261
    %v2324 = vpack.c.b16 %v2264, %v2262
    %v2325 = vpack.c.b16 %v2267, %v2265
    %v2326 = vpack.c.b16 %v2268, %v2266
    %v2327 = vpack.c.b16 %v2271, %v2269
    %v2328 = vpack.c.b16 %v2272, %v2270
    %v2329 = vpack.c.b16 %v2275, %v2273
    %v2330 = vpack.c.b16 %v2276, %v2274
    %v2331 = vpack.c.b16 %v2279, %v2277
    %v2332 = vpack.c.b16 %v2280, %v2278
    %v2333 = vpack.c.b16 %v2283, %v2281
    %v2334 = vpack.c.b16 %v2284, %v2282
    %v2335 = vpack.c.b16 %v2287, %v2285
    %v2336 = vpack.c.b16 %v2288, %v2286
    %v2337 = vpack.c.b16 %v2291, %v2289
    %v2338 = vpack.c.b16 %v2292, %v2290
    %v2339 = vpack.c.b16 %v2295, %v2293
    %v2340 = vpack.c.b16 %v2296, %v2294
    %v2341 = vpack.c.b16 %v2299, %v2297
    %v2342 = vpack.c.b16 %v2300, %v2298
    %v2343 = vpack.c.b16 %v2303, %v2301
    %v2344 = vpack.c.b16 %v2304, %v2302
    %v2345 = vpack.c.b16 %v2307, %v2305
    %v2346 = vpack.c.b16 %v2308, %v2306
    %v2347 = vpack.c.b16 %v2311, %v2309
    %v2348 = vpack.c.b16 %v2312, %v2310
    %v2349 = vpack.c.b16 %v2315, %v2313
    %v2350 = vpack.c.b16 %v2316, %v2314
    %v2351 = vpack.c.b16 %v2319, %v2317
    %v2352 = vpack.c.b16 %v2320, %v2318
    %v2417 = vunpack.c.l.b16 %v2193
    %v2418 = vunpack.c.l.b16 %v2194
    %v2419 = vunpack.c.l.b16 %v2195
    %v2420 = vunpack.c.l.b16 %v2196
    %v2421 = vunpack.c.l.b16 %v2197
    %v2422 = vunpack.c.l.b16 %v2198
    %v2423 = vunpack.c.l.b16 %v2199
    %v2424 = vunpack.c.l.b16 %v2200
    %v2425 = vunpack.c.l.b16 %v2201
    %v2426 = vunpack.c.l.b16 %v2202
    %v2427 = vunpack.c.l.b16 %v2203
    %v2428 = vunpack.c.l.b16 %v2204
    %v2429 = vunpack.c.l.b16 %v2205
    %v2430 = vunpack.c.l.b16 %v2206
    %v2431 = vunpack.c.l.b16 %v2207
    %v2432 = vunpack.c.l.b16 %v2208
    %v2433 = vunpack.c.l.b16 %v2209
    %v2434 = vunpack.c.l.b16 %v2210
    %v2435 = vunpack.c.l.b16 %v2211
    %v2436 = vunpack.c.l.b16 %v2212
    %v2437 = vunpack.c.l.b16 %v2213
    %v2438 = vunpack.c.l.b16 %v2214
    %v2439 = vunpack.c.l.b16 %v2215
    %v2440 = vunpack.c.l.b16 %v2216
    %v2441 = vunpack.c.l.b16 %v2217
    %v2442 = vunpack.c.l.b16 %v2218
    %v2443 = vunpack.c.l.b16 %v2219
    %v2444 = vunpack.c.l.b16 %v2220
    %v2445 = vunpack.c.l.b16 %v2221
    %v2446 = vunpack.c.l.b16 %v2222
    %v2447 = vunpack.c.l.b16 %v2223
    %v2448 = vunpack.c.l.b16 %v2224
    %v2449 = vpack.c.b16 %v2418, %v2417
    %v2450 = vpack.c.b16 %v2420, %v2419
    %v2451 = vpack.c.b16 %v2422, %v2421
    %v2452 = vpack.c.b16 %v2424, %v2423
    %v2453 = vpack.c.b16 %v2426, %v2425
    %v2454 = vpack.c.b16 %v2428, %v2427
    %v2455 = vpack.c.b16 %v2430, %v2429
    %v2456 = vpack.c.b16 %v2432, %v2431
    %v2457 = vpack.c.b16 %v2434, %v2433
    %v2458 = vpack.c.b16 %v2436, %v2435
    %v2459 = vpack.c.b16 %v2438, %v2437
    %v2460 = vpack.c.b16 %v2440, %v2439
    %v2461 = vpack.c.b16 %v2442, %v2441
    %v2462 = vpack.c.b16 %v2444, %v2443
    %v2463 = vpack.c.b16 %v2446, %v2445
    %v2464 = vpack.c.b16 %v2448, %v2447
    %2481 = vmatprep.subr.bf16.mxu0 0
    %2482 = vmatpush1.bf16.msra.mxu0 %v2456
    %2483 = vmatprep.subr.bf16.mxu0 0
    %2484 = vmatpush1.bf16.msra.mxu0 %v2455
    %2485 = vmatprep.subr.bf16.mxu0 0
    %2486 = vmatpush1.bf16.msra.mxu0 %v2454
    %2487 = vmatprep.subr.bf16.mxu0 0
    %2488 = vmatpush1.bf16.msra.mxu0 %v2453
    %2489 = vmatprep.subr.bf16.mxu0 0
    %2490 = vmatpush1.bf16.msra.mxu0 %v2452
    %2491 = vmatprep.subr.bf16.mxu0 0
    %2492 = vmatpush1.bf16.msra.mxu0 %v2451
    %2493 = vmatprep.subr.bf16.mxu0 0
    %2494 = vmatpush1.bf16.msra.mxu0 %v2450
    %2495 = vmatprep.subr.bf16.mxu0 0
    %2496 = vmatpush1.bf16.msra.mxu0 %v2449
    %2497 = vmatprep.subr.bf16.mxu0 0
    %2498 = vmatpush2.bf16.msra.mxu0 %v2464
    %2499 = vmatprep.subr.bf16.mxu0 0
    %2500 = vmatpush2.bf16.msra.mxu0 %v2463
    %2501 = vmatprep.subr.bf16.mxu0 0
    %2502 = vmatpush2.bf16.msra.mxu0 %v2462
    %2503 = vmatprep.subr.bf16.mxu0 0
    %2504 = vmatpush2.bf16.msra.mxu0 %v2461
    %2505 = vmatprep.subr.bf16.mxu0 0
    %2506 = vmatpush2.bf16.msra.mxu0 %v2460
    %2507 = vmatprep.subr.bf16.mxu0 0
    %2508 = vmatpush2.bf16.msra.mxu0 %v2459
    %2509 = vmatprep.subr.bf16.mxu0 0
    %2510 = vmatpush2.bf16.msra.mxu0 %v2458
    %2511 = vmatprep.subr.bf16.mxu0 0
    %2512 = vmatpush2.bf16.msra.mxu0 %v2457
    %2513 = vmatprep.mubr.bf16.mxu0 %v2322
    %2514 = vmatmul.mubr.bf16.gmra.mxu0 %v2321
    %v2515 = vpop.f32.mrf.mxu0
    %v2516 = vadd.f32 0.0, %v2515
    %v2517 = vpop.f32.mrf.mxu0
    %v2518 = vpop.f32.mrf.mxu0
    %v2519 = vadd.f32 0.0, %v2518
    %v2520 = vpop.f32.mrf.mxu0
    %2521 = vmatprep.mubr.bf16.mxu0 %v2324
    %2522 = vmatmul.mubr.bf16.gmra.mxu0 %v2323
    %v2523 = vpop.f32.mrf.mxu0
    %v2524 = vadd.f32 0.0, %v2523
    %v2525 = vpop.f32.mrf.mxu0
    %v2526 = vpop.f32.mrf.mxu0
    %v2527 = vadd.f32 0.0, %v2526
    %v2528 = vpop.f32.mrf.mxu0
    %2529 = vmatprep.mubr.bf16.mxu0 %v2326
    %2530 = vmatmul.mubr.bf16.gmra.mxu0 %v2325
    %v2531 = vpop.f32.mrf.mxu0
    %v2532 = vadd.f32 0.0, %v2531
    %v2533 = vpop.f32.mrf.mxu0
    %v2534 = vpop.f32.mrf.mxu0
    %v2535 = vadd.f32 0.0, %v2534
    %v2536 = vpop.f32.mrf.mxu0
    %2537 = vmatprep.mubr.bf16.mxu0 %v2328
    %2538 = vmatmul.mubr.bf16.gmra.mxu0 %v2327
    %v2539 = vpop.f32.mrf.mxu0
    %v2540 = vadd.f32 0.0, %v2539
    %v2541 = vpop.f32.mrf.mxu0
    %v2542 = vpop.f32.mrf.mxu0
    %v2543 = vadd.f32 0.0, %v2542
    %v2544 = vpop.f32.mrf.mxu0
    %2545 = vmatprep.mubr.bf16.mxu0 %v2330
    %2546 = vmatmul.mubr.bf16.gmra.mxu0 %v2329
    %v2547 = vpop.f32.mrf.mxu0
    %v2548 = vadd.f32 0.0, %v2547
    %v2549 = vpop.f32.mrf.mxu0
    %v2550 = vpop.f32.mrf.mxu0
    %v2551 = vadd.f32 0.0, %v2550
    %v2552 = vpop.f32.mrf.mxu0
    %2553 = vmatprep.mubr.bf16.mxu0 %v2332
    %2554 = vmatmul.mubr.bf16.gmra.mxu0 %v2331
    %v2555 = vpop.f32.mrf.mxu0
    %v2556 = vadd.f32 0.0, %v2555
    %v2557 = vpop.f32.mrf.mxu0
    %v2558 = vpop.f32.mrf.mxu0
    %v2559 = vadd.f32 0.0, %v2558
    %v2560 = vpop.f32.mrf.mxu0
    %2561 = vmatprep.mubr.bf16.mxu0 %v2334
    %2562 = vmatmul.mubr.bf16.gmra.mxu0 %v2333
    %v2563 = vpop.f32.mrf.mxu0
    %v2564 = vadd.f32 0.0, %v2563
    %v2565 = vpop.f32.mrf.mxu0
    %v2566 = vpop.f32.mrf.mxu0
    %v2567 = vadd.f32 0.0, %v2566
    %v2568 = vpop.f32.mrf.mxu0
    %2569 = vmatprep.mubr.bf16.mxu0 %v2336
    %2570 = vmatmul.mubr.bf16.gmra.mxu0 %v2335
    %v2571 = vpop.f32.mrf.mxu0
    %v2572 = vadd.f32 0.0, %v2571
    %v2573 = vpop.f32.mrf.mxu0
    %v2574 = vpop.f32.mrf.mxu0
    %v2575 = vadd.f32 0.0, %v2574
    %v2576 = vpop.f32.mrf.mxu0
    %2577 = vmatprep.mubr.bf16.mxu0 %v2338
    %2578 = vmatmul.mubr.bf16.gmra.mxu0 %v2337
    %v2579 = vpop.f32.mrf.mxu0
    %v2580 = vadd.f32 0.0, %v2579
    %v2581 = vpop.f32.mrf.mxu0
    %v2582 = vpop.f32.mrf.mxu0
    %v2583 = vadd.f32 0.0, %v2582
    %v2584 = vpop.f32.mrf.mxu0
    %2585 = vmatprep.mubr.bf16.mxu0 %v2340
    %2586 = vmatmul.mubr.bf16.gmra.mxu0 %v2339
    %v2587 = vpop.f32.mrf.mxu0
    %v2588 = vadd.f32 0.0, %v2587
    %v2589 = vpop.f32.mrf.mxu0
    %v2590 = vpop.f32.mrf.mxu0
    %v2591 = vadd.f32 0.0, %v2590
    %v2592 = vpop.f32.mrf.mxu0
    %2593 = vmatprep.mubr.bf16.mxu0 %v2342
    %2594 = vmatmul.mubr.bf16.gmra.mxu0 %v2341
    %v2595 = vpop.f32.mrf.mxu0
    %v2596 = vadd.f32 0.0, %v2595
    %v2597 = vpop.f32.mrf.mxu0
    %v2598 = vpop.f32.mrf.mxu0
    %v2599 = vadd.f32 0.0, %v2598
    %v2600 = vpop.f32.mrf.mxu0
    %2601 = vmatprep.mubr.bf16.mxu0 %v2344
    %2602 = vmatmul.mubr.bf16.gmra.mxu0 %v2343
    %v2603 = vpop.f32.mrf.mxu0
    %v2604 = vadd.f32 0.0, %v2603
    %v2605 = vpop.f32.mrf.mxu0
    %v2606 = vpop.f32.mrf.mxu0
    %v2607 = vadd.f32 0.0, %v2606
    %v2608 = vpop.f32.mrf.mxu0
    %2609 = vmatprep.mubr.bf16.mxu0 %v2346
    %2610 = vmatmul.mubr.bf16.gmra.mxu0 %v2345
    %v2611 = vpop.f32.mrf.mxu0
    %v2612 = vadd.f32 0.0, %v2611
    %v2613 = vpop.f32.mrf.mxu0
    %v2614 = vpop.f32.mrf.mxu0
    %v2615 = vadd.f32 0.0, %v2614
    %v2616 = vpop.f32.mrf.mxu0
    %2617 = vmatprep.mubr.bf16.mxu0 %v2348
    %2618 = vmatmul.mubr.bf16.gmra.mxu0 %v2347
    %v2619 = vpop.f32.mrf.mxu0
    %v2620 = vadd.f32 0.0, %v2619
    %v2621 = vpop.f32.mrf.mxu0
    %v2622 = vpop.f32.mrf.mxu0
    %v2623 = vadd.f32 0.0, %v2622
    %v2624 = vpop.f32.mrf.mxu0
    %2625 = vmatprep.mubr.bf16.mxu0 %v2350
    %2626 = vmatmul.mubr.bf16.gmra.mxu0 %v2349
    %v2627 = vpop.f32.mrf.mxu0
    %v2628 = vadd.f32 0.0, %v2627
    %v2629 = vpop.f32.mrf.mxu0
    %v2630 = vpop.f32.mrf.mxu0
    %v2631 = vadd.f32 0.0, %v2630
    %v2632 = vpop.f32.mrf.mxu0
    %2633 = vmatprep.mubr.bf16.mxu0 %v2352
    %2634 = vmatmul.mubr.bf16.gmra.mxu0 %v2351
    %v2635 = vpop.f32.mrf.mxu0
    %v2636 = vadd.f32 0.0, %v2635
    %v2637 = vpop.f32.mrf.mxu0
    %v2638 = vpop.f32.mrf.mxu0
    %v2639 = vadd.f32 0.0, %v2638
    %v2640 = vpop.f32.mrf.mxu0
    %2641 = vdwg.mxu0
    %v2642 = vpack.c.bf16 %v2519, %v2516
    %v2643 = vpack.c.bf16 %v2527, %v2524
    %v2644 = vpack.c.bf16 %v2535, %v2532
    %v2645 = vpack.c.bf16 %v2543, %v2540
    %v2646 = vpack.c.bf16 %v2551, %v2548
    %v2647 = vpack.c.bf16 %v2559, %v2556
    %v2648 = vpack.c.bf16 %v2567, %v2564
    %v2649 = vpack.c.bf16 %v2575, %v2572
    %v2650 = vpack.c.bf16 %v2583, %v2580
    %v2651 = vpack.c.bf16 %v2591, %v2588
    %v2652 = vpack.c.bf16 %v2599, %v2596
    %v2653 = vpack.c.bf16 %v2607, %v2604
    %v2654 = vpack.c.bf16 %v2615, %v2612
    %v2655 = vpack.c.bf16 %v2623, %v2620
    %v2656 = vpack.c.bf16 %v2631, %v2628
    %v2657 = vpack.c.bf16 %v2639, %v2636
    %v2658 = vld [vmem:[#allocation10] sm:$0xf]
    %v2659 = vld [vmem:[#allocation10 + $0x4] sm:$0xf]
    %v2660 = vld [vmem:[#allocation10 + $0x8] sm:$0xf]
    %v2661 = vld [vmem:[#allocation10 + $0xc] sm:$0xf]
    %v2662 = vld [vmem:[#allocation10 + $0x10] sm:$0xf]
    %v2663 = vld [vmem:[#allocation10 + $0x14] sm:$0xf]
    %v2664 = vld [vmem:[#allocation10 + $0x18] sm:$0xf]
    %v2665 = vld [vmem:[#allocation10 + $0x1c] sm:$0xf]
    %v2666 = vld [vmem:[%s7] sm:$0x1]
    %v2668 = vlaneseq
    %v2669 = vshrl.u32 %v2668, 7
    %v2670 = vsub.s32 0, %v2669
    %v2671 = vrot.slane %v2666, %v2670
    %v2681 = vunpack.c.l.b16 %v2658
    %v2682 = vunpack.c.l.b16 %v2659
    %v2683 = vunpack.c.l.b16 %v2660
    %v2684 = vunpack.c.l.b16 %v2661
    %v2685 = vunpack.c.l.b16 %v2662
    %v2686 = vunpack.c.l.b16 %v2663
    %v2687 = vunpack.c.l.b16 %v2664
    %v2688 = vunpack.c.l.b16 %v2665
    %v2689 = vpack.c.b16 %v2682, %v2681
    %v2690 = vpack.c.b16 %v2684, %v2683
    %v2691 = vpack.c.b16 %v2686, %v2685
    %v2692 = vpack.c.b16 %v2688, %v2687
    %vm2697 = vcmask 523264
    %v2699 = vsel %vm2697, %v2642, 0
    %v2702 = vsel %vm2697, %v2643, 0
    %v2705 = vsel %vm2697, %v2644, 0
    %v2708 = vsel %vm2697, %v2645, 0
    %v2711 = vsel %vm2697, %v2646, 0
    %v2714 = vsel %vm2697, %v2647, 0
    %v2717 = vsel %vm2697, %v2648, 0
    %v2720 = vsel %vm2697, %v2649, 0
    %v2723 = vsel %vm2697, %v2650, 0
    %v2726 = vsel %vm2697, %v2651, 0
    %v2729 = vsel %vm2697, %v2652, 0
    %v2732 = vsel %vm2697, %v2653, 0
    %v2735 = vsel %vm2697, %v2654, 0
    %v2738 = vsel %vm2697, %v2655, 0
    %v2741 = vsel %vm2697, %v2656, 0
    %v2744 = vsel %vm2697, %v2657, 0
    %2746 = vmatprep.subr.bf16.mxu0 0
    %2747 = vmatpush1.bf16.msra.mxu0 0
    %2748 = vmatprep.subr.bf16.mxu0 0
    %2749 = vmatpush1.bf16.msra.mxu0 0
    %2750 = vmatprep.subr.bf16.mxu0 0
    %2751 = vmatpush1.bf16.msra.mxu0 0
    %2752 = vmatprep.subr.bf16.mxu0 0
    %2753 = vmatpush1.bf16.msra.mxu0 0
    %2754 = vmatprep.subr.bf16.mxu0 0
    %2755 = vmatpush1.bf16.msra.mxu0 %v2692
    %2756 = vmatprep.subr.bf16.mxu0 0
    %2757 = vmatpush1.bf16.msra.mxu0 %v2691
    %2758 = vmatprep.subr.bf16.mxu0 0
    %2759 = vmatpush1.bf16.msra.mxu0 %v2690
    %2760 = vmatprep.subr.bf16.mxu0 0
    %2761 = vmatpush1.bf16.msra.mxu0 %v2689
    %2762 = vmatprep.subr.bf16.mxu0 0
    %2763 = vmatpush2.bf16.msra.mxu0 0
    %2764 = vmatprep.subr.bf16.mxu0 0
    %2765 = vmatpush2.bf16.msra.mxu0 0
    %2766 = vmatprep.subr.bf16.mxu0 0
    %2767 = vmatpush2.bf16.msra.mxu0 0
    %2768 = vmatprep.subr.bf16.mxu0 0
    %2769 = vmatpush2.bf16.msra.mxu0 0
    %2770 = vmatprep.subr.bf16.mxu0 0
    %2771 = vmatpush2.bf16.msra.mxu0 0
    %2772 = vmatprep.subr.bf16.mxu0 0
    %2773 = vmatpush2.bf16.msra.mxu0 0
    %2774 = vmatprep.subr.bf16.mxu0 0
    %2775 = vmatpush2.bf16.msra.mxu0 0
    %2776 = vmatprep.subr.bf16.mxu0 0
    %2777 = vmatpush2.bf16.msra.mxu0 0
    %2778 = vmatprep.mubr.bf16.mxu0 0
    %2779 = vmatmul.mubr.bf16.gmra.mxu0 %v2699
    %v2780 = vpop.f32.mrf.mxu0
    %v2781 = vadd.f32 %v2671, %v2780
    %v2782 = vpop.f32.mrf.mxu0
    %v2783 = vpop.f32.mrf.mxu0
    %v2784 = vadd.f32 %v2671, %v2783
    %v2785 = vpop.f32.mrf.mxu0
    %2786 = vmatprep.mubr.bf16.mxu0 0
    %2787 = vmatmul.mubr.bf16.gmra.mxu0 %v2702
    %v2788 = vpop.f32.mrf.mxu0
    %v2789 = vadd.f32 %v2671, %v2788
    %v2790 = vpop.f32.mrf.mxu0
    %v2791 = vpop.f32.mrf.mxu0
    %v2792 = vadd.f32 %v2671, %v2791
    %v2793 = vpop.f32.mrf.mxu0
    %2794 = vmatprep.mubr.bf16.mxu0 0
    %2795 = vmatmul.mubr.bf16.gmra.mxu0 %v2705
    %v2796 = vpop.f32.mrf.mxu0
    %v2797 = vadd.f32 %v2671, %v2796
    %v2798 = vpop.f32.mrf.mxu0
    %v2799 = vpop.f32.mrf.mxu0
    %v2800 = vadd.f32 %v2671, %v2799
    %v2801 = vpop.f32.mrf.mxu0
    %2802 = vmatprep.mubr.bf16.mxu0 0
    %2803 = vmatmul.mubr.bf16.gmra.mxu0 %v2708
    %v2804 = vpop.f32.mrf.mxu0
    %v2805 = vadd.f32 %v2671, %v2804
    %v2806 = vpop.f32.mrf.mxu0
    %v2807 = vpop.f32.mrf.mxu0
    %v2808 = vadd.f32 %v2671, %v2807
    %v2809 = vpop.f32.mrf.mxu0
    %2810 = vmatprep.mubr.bf16.mxu0 0
    %2811 = vmatmul.mubr.bf16.gmra.mxu0 %v2711
    %v2812 = vpop.f32.mrf.mxu0
    %v2813 = vadd.f32 %v2671, %v2812
    %v2814 = vpop.f32.mrf.mxu0
    %v2815 = vpop.f32.mrf.mxu0
    %v2816 = vadd.f32 %v2671, %v2815
    %v2817 = vpop.f32.mrf.mxu0
    %2818 = vmatprep.mubr.bf16.mxu0 0
    %2819 = vmatmul.mubr.bf16.gmra.mxu0 %v2714
    %v2820 = vpop.f32.mrf.mxu0
    %v2821 = vadd.f32 %v2671, %v2820
    %v2822 = vpop.f32.mrf.mxu0
    %v2823 = vpop.f32.mrf.mxu0
    %v2824 = vadd.f32 %v2671, %v2823
    %v2825 = vpop.f32.mrf.mxu0
    %2826 = vmatprep.mubr.bf16.mxu0 0
    %2827 = vmatmul.mubr.bf16.gmra.mxu0 %v2717
    %v2828 = vpop.f32.mrf.mxu0
    %v2829 = vadd.f32 %v2671, %v2828
    %v2830 = vpop.f32.mrf.mxu0
    %v2831 = vpop.f32.mrf.mxu0
    %v2832 = vadd.f32 %v2671, %v2831
    %v2833 = vpop.f32.mrf.mxu0
    %2834 = vmatprep.mubr.bf16.mxu0 0
    %2835 = vmatmul.mubr.bf16.gmra.mxu0 %v2720
    %v2836 = vpop.f32.mrf.mxu0
    %v2837 = vadd.f32 %v2671, %v2836
    %v2838 = vpop.f32.mrf.mxu0
    %v2839 = vpop.f32.mrf.mxu0
    %v2840 = vadd.f32 %v2671, %v2839
    %v2841 = vpop.f32.mrf.mxu0
    %2842 = vmatprep.mubr.bf16.mxu0 0
    %2843 = vmatmul.mubr.bf16.gmra.mxu0 %v2723
    %v2844 = vpop.f32.mrf.mxu0
    %v2845 = vadd.f32 %v2671, %v2844
    %v2846 = vpop.f32.mrf.mxu0
    %v2847 = vpop.f32.mrf.mxu0
    %v2848 = vadd.f32 %v2671, %v2847
    %v2849 = vpop.f32.mrf.mxu0
    %2850 = vmatprep.mubr.bf16.mxu0 0
    %2851 = vmatmul.mubr.bf16.gmra.mxu0 %v2726
    %v2852 = vpop.f32.mrf.mxu0
    %v2853 = vadd.f32 %v2671, %v2852
    %v2854 = vpop.f32.mrf.mxu0
    %v2855 = vpop.f32.mrf.mxu0
    %v2856 = vadd.f32 %v2671, %v2855
    %v2857 = vpop.f32.mrf.mxu0
    %2858 = vmatprep.mubr.bf16.mxu0 0
    %2859 = vmatmul.mubr.bf16.gmra.mxu0 %v2729
    %v2860 = vpop.f32.mrf.mxu0
    %v2861 = vadd.f32 %v2671, %v2860
    %v2862 = vpop.f32.mrf.mxu0
    %v2863 = vpop.f32.mrf.mxu0
    %v2864 = vadd.f32 %v2671, %v2863
    %v2865 = vpop.f32.mrf.mxu0
    %2866 = vmatprep.mubr.bf16.mxu0 0
    %2867 = vmatmul.mubr.bf16.gmra.mxu0 %v2732
    %v2868 = vpop.f32.mrf.mxu0
    %v2869 = vadd.f32 %v2671, %v2868
    %v2870 = vpop.f32.mrf.mxu0
    %v2871 = vpop.f32.mrf.mxu0
    %v2872 = vadd.f32 %v2671, %v2871
    %v2873 = vpop.f32.mrf.mxu0
    %2874 = vmatprep.mubr.bf16.mxu0 0
    %2875 = vmatmul.mubr.bf16.gmra.mxu0 %v2735
    %v2876 = vpop.f32.mrf.mxu0
    %v2877 = vadd.f32 %v2671, %v2876
    %v2878 = vpop.f32.mrf.mxu0
    %v2879 = vpop.f32.mrf.mxu0
    %v2880 = vadd.f32 %v2671, %v2879
    %v2881 = vpop.f32.mrf.mxu0
    %2882 = vmatprep.mubr.bf16.mxu0 0
    %2883 = vmatmul.mubr.bf16.gmra.mxu0 %v2738
    %v2884 = vpop.f32.mrf.mxu0
    %v2885 = vadd.f32 %v2671, %v2884
    %v2886 = vpop.f32.mrf.mxu0
    %v2887 = vpop.f32.mrf.mxu0
    %v2888 = vadd.f32 %v2671, %v2887
    %v2889 = vpop.f32.mrf.mxu0
    %2890 = vmatprep.mubr.bf16.mxu0 0
    %2891 = vmatmul.mubr.bf16.gmra.mxu0 %v2741
    %v2892 = vpop.f32.mrf.mxu0
    %v2893 = vadd.f32 %v2671, %v2892
    %v2894 = vpop.f32.mrf.mxu0
    %v2895 = vpop.f32.mrf.mxu0
    %v2896 = vadd.f32 %v2671, %v2895
    %v2897 = vpop.f32.mrf.mxu0
    %2898 = vmatprep.mubr.bf16.mxu0 0
    %2899 = vmatmul.mubr.bf16.gmra.mxu0 %v2744
    %v2900 = vpop.f32.mrf.mxu0
    %v2901 = vadd.f32 %v2671, %v2900
    %v2902 = vpop.f32.mrf.mxu0
    %v2903 = vpop.f32.mrf.mxu0
    %v2904 = vadd.f32 %v2671, %v2903
    %v2905 = vpop.f32.mrf.mxu0
    %2906 = vdwg.mxu0
    %2907 = vst [vmem:[#allocation12] sm:$0xff] %v2781
    %2908 = vst [vmem:[#allocation12 + $0x8] sm:$0xff] %v2784
    %2909 = vst [vmem:[#allocation12 + $0x10] sm:$0xff] %v2789
    %2910 = vst [vmem:[#allocation12 + $0x18] sm:$0xff] %v2792
    %2911 = vst [vmem:[#allocation12 + $0x20] sm:$0xff] %v2797
    %2912 = vst [vmem:[#allocation12 + $0x28] sm:$0xff] %v2800
    %2913 = vst [vmem:[#allocation12 + $0x30] sm:$0xff] %v2805
    %2914 = vst [vmem:[#allocation12 + $0x38] sm:$0xff] %v2808
    %2915 = vst [vmem:[#allocation12 + $0x40] sm:$0xff] %v2813
    %2916 = vst [vmem:[#allocation12 + $0x48] sm:$0xff] %v2816
    %2917 = vst [vmem:[#allocation12 + $0x50] sm:$0xff] %v2821
    %2918 = vst [vmem:[#allocation12 + $0x58] sm:$0xff] %v2824
    %2919 = vst [vmem:[#allocation12 + $0x60] sm:$0xff] %v2829
    %2920 = vst [vmem:[#allocation12 + $0x68] sm:$0xff] %v2832
    %2921 = vst [vmem:[#allocation12 + $0x70] sm:$0xff] %v2837
    %2922 = vst [vmem:[#allocation12 + $0x78] sm:$0xff] %v2840
    %2923 = vst [vmem:[#allocation12 + $0x80] sm:$0xff] %v2845
    %2924 = vst [vmem:[#allocation12 + $0x88] sm:$0xff] %v2848
    %2925 = vst [vmem:[#allocation12 + $0x90] sm:$0xff] %v2853
    %2926 = vst [vmem:[#allocation12 + $0x98] sm:$0xff] %v2856
    %2927 = vst [vmem:[#allocation12 + $0xa0] sm:$0xff] %v2861
    %2928 = vst [vmem:[#allocation12 + $0xa8] sm:$0xff] %v2864
    %2929 = vst [vmem:[#allocation12 + $0xb0] sm:$0xff] %v2869
    %2930 = vst [vmem:[#allocation12 + $0xb8] sm:$0xff] %v2872
    %2931 = vst [vmem:[#allocation12 + $0xc0] sm:$0xff] %v2877
    %2932 = vst [vmem:[#allocation12 + $0xc8] sm:$0xff] %v2880
    %2933 = vst [vmem:[#allocation12 + $0xd0] sm:$0xff] %v2885
    %2934 = vst [vmem:[#allocation12 + $0xd8] sm:$0xff] %v2888
    %2935 = vst [vmem:[#allocation12 + $0xe0] sm:$0xff] %v2893
    %2936 = vst [vmem:[#allocation12 + $0xe8] sm:$0xff] %v2896
    %2937 = vst [vmem:[#allocation12 + $0xf0] sm:$0xff] %v2901
    %2938 = vst [vmem:[#allocation12 + $0xf8] sm:$0xff] %v2904
    // Predicated region
    $region72: #{tpu_custom_call.1} parent=1 // pred_check
      _
    $region73: #{tpu_custom_call.1} parent=1 // pred_check_branch
      %2940 = sbr.rel (0) target = $region75
    $region74: #{tpu_custom_call.1} parent=1 // pred_region
      %s2942 = ssub.s32 4096, 4096
      %2943 = vsyncadd [#allocation9], %s2942
      %s2944 = sshll.u32 [#allocation12], 4
      %s2945 = int_to_ptr.vmem [resolvable:$true] %s2944
      %2950 = dma.vmem_to_hbm [thread:$0]  %s2945, 4096, %s8, [#allocation9], 128, 128, 8
    $region75: #{tpu_custom_call.1} parent=1 // pred_fallthru
      _
    // Predicated region
    $region76: #{tpu_custom_call.1} parent=1 // pred_check
      _
    $region77: #{tpu_custom_call.1} parent=1 // pred_check_branch
      %2952 = sbr.rel (0) target = $region79
    $region78: #{tpu_custom_call.1} parent=1 // pred_region
      %2953 = dma.done [#allocation9], 4096
    $region79: #{tpu_custom_call.1} parent=1 // pred_fallthru
      _
    %2954 = vsyncpa [#allocation8], 1
    %2955 = vsyncpa [#allocation11], 1
    %2956 = vsyncpa [#allocation9], 1
  %2957 = vsyncmov [#allocation6]
  %s2958 = vpop.sfrf %2957
  %p2959 = scmp.eq.s32.totalorder %s2958, 0
  %p2960 = pneg %p2959
  %2962 = shalt.err (%p2960)

</llo_original>
